<compile_context>
chip_gen: v6e
topology: v6e:2x2x1
jax: 0.10.0
libtpu: 0.0.40
codegen_flags: <defaults>
</compile_context>

<pallas_src>
import functools
import jax
import jax.numpy as jnp
from jax.experimental import pallas as pl
from jax.experimental.pallas import tpu as pltpu  # noqa: F401  (TPU backend)

# ---- model hyper-parameters (small, consistent with the module) ----
BATCH = 8
INPUT_SIZE = 4
SEQ_LEN = 8
IDIM = SEQ_LEN * INPUT_SIZE      # 32
HDIM = 32
HL = 2
NUM_CLASSES = 2


def _rnn_classifier_kernel(seq_len, hl, hdim,
                           x_ref, w0_blk_ref, w_hh0_ref, b0_ref,
                           w_cat_ref, b_cat_ref, lin_w_ref, lin_b_ref,
                           out_ref):
    batch = x_ref.shape[0]

    # ---- hoisted layer-0 input projection for ALL time steps ----
    # x (B, IDIM) @ block-diagonal W0 (IDIM, SEQ_LEN*HDIM) -> (B, SEQ_LEN*HDIM)
    # column block t holds x_t @ W_ih0.
    proj0 = jnp.dot(x_ref[...], w0_blk_ref[...],
                    preferred_element_type=jnp.float32)

    w_hh0 = w_hh0_ref[...]                         # (hdim, hdim)
    b0 = b0_ref[...]                               # (1, hdim) = b_ih0 + b_hh0

    # ---- register-carried hidden states, fully-unrolled time loop ----
    h = [jnp.zeros((batch, hdim), jnp.float32) for _ in range(hl)]
    inp = h[0]
    for t in range(seq_len):
        # layer 0: recurrent matmul only (input projection already hoisted)
        pre0 = (proj0[:, t * hdim:(t + 1) * hdim]
                + jnp.dot(h[0], w_hh0, preferred_element_type=jnp.float32)
                + b0)
        h[0] = jnp.tanh(pre0)
        inp = h[0]

        # layers 1 .. hl-1: single fused dot over [inp | h_prev]
        for l in range(1, hl):
            cat = jnp.concatenate([inp, h[l]], axis=1)        # (B, 2*hdim)
            pre = (jnp.dot(cat, w_cat_ref[l - 1],
                           preferred_element_type=jnp.float32)
                   + b_cat_ref[pl.ds(l - 1, 1), :])
            h[l] = jnp.tanh(pre)
            inp = h[l]

    # ---- final linear on the last time step of the top layer ----
    out_ref[...] = (jnp.dot(inp, lin_w_ref[...],
                            preferred_element_type=jnp.float32)
                    + lin_b_ref[...])


def init_params(key):
    """Deterministic init mimicking PyTorch's U(-1/sqrt(hdim), 1/sqrt(hdim)).

    Weights are stored already transposed: (in_features, out_features)."""
    k = 1.0 / jnp.sqrt(jnp.float32(HDIM))
    keys = jax.random.split(key, 8)
    u = lambda kk, shape: jax.random.uniform(kk, shape, jnp.float32, -k, k)

    w_ih0 = u(keys[0], (INPUT_SIZE, HDIM))            # layer 0 input weights
    b_ih0 = u(keys[1], (1, HDIM))
    if HL > 1:
        w_ihr = u(keys[2], (HL - 1, HDIM, HDIM))      # layers >= 1 input weights
        b_ihr = u(keys[3], (HL - 1, HDIM))
    else:
        w_ihr = jnp.zeros((0, HDIM, HDIM), jnp.float32)
        b_ihr = jnp.zeros((0, HDIM), jnp.float32)
    w_hh = u(keys[4], (HL, HDIM, HDIM))               # recurrent weights
    b_hh = u(keys[5], (HL, HDIM))
    lin_w = u(keys[6], (HDIM, NUM_CLASSES))           # classifier (hdim -> classes)
    lin_b = u(keys[7], (1, NUM_CLASSES))
    return (w_ih0, b_ih0, w_ihr, b_ihr, w_hh, b_hh, lin_w, lin_b)


def prepare_kernel_params(params):
    """Host-side weight prep: block-diag layer-0 weight, fused layer weights,
    pre-summed biases."""
    (w_ih0, b_ih0, w_ihr, b_ihr, w_hh, b_hh, lin_w, lin_b) = params

    # Block-diagonal layer-0 input weight: (IDIM, SEQ_LEN*HDIM) so that
    # (x @ w0_blk)[:, t*HDIM:(t+1)*HDIM] == x_t @ W_ih0 for every t.
    w0_blk = jnp.zeros((IDIM, SEQ_LEN * HDIM), jnp.float32)
    for t in range(SEQ_LEN):
        w0_blk = w0_blk.at[t * INPUT_SIZE:(t + 1) * INPUT_SIZE,
                           t * HDIM:(t + 1) * HDIM].set(w_ih0)

    w_hh0 = w_hh[0]                                   # (HDIM, HDIM)
    b0 = b_ih0 + b_hh[0][None, :]                     # (1, HDIM)

    if HL > 1:
        # fused [W_ih_l ; W_hh_l] stacked along the contraction dim.
        w_cat = jnp.concatenate([w_ihr, w_hh[1:]], axis=1)   # (HL-1, 2*HDIM, HDIM)
        b_cat = b_ihr + b_hh[1:]                             # (HL-1, HDIM)
    else:
        # dummies (never read by the kernel when HL == 1)
        w_cat = jnp.zeros((1, 2 * HDIM, HDIM), jnp.float32)
        b_cat = jnp.zeros((1, HDIM), jnp.float32)

    return (w0_blk, w_hh0, b0, w_cat, b_cat, lin_w, lin_b)


def sequence_classifier_forward(x, kparams):
    """x: (batch, idim) float32.  Returns (batch, num_classes) float32."""
    batch = x.shape[0]
    (w0_blk, w_hh0, b0, w_cat, b_cat, lin_w, lin_b) = kparams

    full = lambda a: pl.BlockSpec(a.shape, lambda: (0,) * a.ndim)
    kernel = functools.partial(_rnn_classifier_kernel, SEQ_LEN, HL, HDIM)

    return pl.pallas_call(
        kernel,
        out_shape=jax.ShapeDtypeStruct((batch, NUM_CLASSES), jnp.float32),
        in_specs=[full(x), full(w0_blk), full(w_hh0), full(b0),
                  full(w_cat), full(b_cat), full(lin_w), full(lin_b)],
        out_specs=pl.BlockSpec((batch, NUM_CLASSES), lambda: (0, 0)),
    )(x, w0_blk, w_hh0, b0, w_cat, b_cat, lin_w, lin_b)


def reference_forward(x, params):
    """Pure-JAX reference of the same forward pass (for correctness check)."""
    (w_ih0, b_ih0, w_ihr, b_ihr, w_hh, b_hh, lin_w, lin_b) = params
    batch = x.shape[0]
    xs = x.reshape(batch, SEQ_LEN, INPUT_SIZE)
    h = [jnp.zeros((batch, HDIM), jnp.float32) for _ in range(HL)]
    last = None
    for t in range(SEQ_LEN):
        inp = xs[:, t, :]
        h[0] = jnp.tanh(inp @ w_ih0 + b_ih0 + h[0] @ w_hh[0] + b_hh[0][None, :])
        inp = h[0]
        for l in range(1, HL):
            h[l] = jnp.tanh(inp @ w_ihr[l - 1] + b_ihr[l - 1][None, :]
                            + h[l] @ w_hh[l] + b_hh[l][None, :])
            inp = h[l]
        last = inp
    return last @ lin_w + lin_b


if __name__ == "__main__":
    key = jax.random.PRNGKey(0)
    pkey, xkey = jax.random.split(key)
    raw_params = init_params(pkey)
    kparams = prepare_kernel_params(raw_params)
    x = jax.random.normal(xkey, (BATCH, IDIM), jnp.float32)

    out = sequence_classifier_forward(x, kparams)
    out = jax.block_until_ready(out)

    ref = reference_forward(x, raw_params)
    assert out.shape == (BATCH, NUM_CLASSES)
    assert jnp.allclose(out, ref, atol=1e-5, rtol=1e-5), "mismatch vs reference"
    print("KERNEL_OK")
</pallas_src>

<mosaic_0001>
module attributes {stable_mosaic.version = 11 : i64} {
  func.func @_rnn_classifier_kernel(%arg0: memref<8x32xf32, #tpu.memory_space<vmem>>, %arg1: memref<32x256xf32, #tpu.memory_space<vmem>>, %arg2: memref<32x32xf32, #tpu.memory_space<vmem>>, %arg3: memref<1x32xf32, #tpu.memory_space<vmem>>, %arg4: memref<1x64x32xf32, #tpu.memory_space<vmem>>, %arg5: memref<1x32xf32, #tpu.memory_space<vmem>>, %arg6: memref<32x2xf32, #tpu.memory_space<vmem>>, %arg7: memref<1x2xf32, #tpu.memory_space<vmem>>, %arg8: memref<8x2xf32, #tpu.memory_space<vmem>>) attributes {dimension_semantics = [], scalar_prefetch = 0 : i64, scratch_operands = 0 : i64, tpu.core_type = #tpu.core_type<tc>} {
    %c0 = arith.constant 0 : index
    %c0_0 = arith.constant 0 : index
    %0 = vector.load %arg0[%c0, %c0_0] : memref<8x32xf32, #tpu.memory_space<vmem>>, vector<8x32xf32>
    %c0_1 = arith.constant 0 : index
    %c0_2 = arith.constant 0 : index
    %1 = vector.load %arg1[%c0_1, %c0_2] : memref<32x256xf32, #tpu.memory_space<vmem>>, vector<32x256xf32>
    %cst = arith.constant dense<0.000000e+00> : vector<8x256xf32>
    %2 = tpu.matmul %0, %1, %cst {dimension_numbers = #tpu.dot_dimension_numbers<[1], [0], [0], [1], [0, 0, 1, 1], [], []>} : vector<8x32xf32>, vector<32x256xf32>, vector<8x256xf32> -> vector<8x256xf32>
    %c0_3 = arith.constant 0 : index
    %c0_4 = arith.constant 0 : index
    %3 = vector.load %arg2[%c0_3, %c0_4] : memref<32x32xf32, #tpu.memory_space<vmem>>, vector<32x32xf32>
    %c0_5 = arith.constant 0 : index
    %c0_6 = arith.constant 0 : index
    %4 = vector.load %arg3[%c0_5, %c0_6] : memref<1x32xf32, #tpu.memory_space<vmem>>, vector<1x32xf32>
    %cst_7 = arith.constant 0.000000e+00 : f32
    %5 = vector.broadcast %cst_7 : f32 to vector<8x32xf32>
    %cst_8 = arith.constant 0.000000e+00 : f32
    %6 = vector.broadcast %cst_8 : f32 to vector<8x32xf32>
    %7 = vector.extract_strided_slice %2 {offsets = [0, 0], sizes = [8, 32], strides = [1, 1]} : vector<8x256xf32> to vector<8x32xf32>
    %cst_9 = arith.constant dense<0.000000e+00> : vector<8x32xf32>
    %8 = tpu.matmul %5, %3, %cst_9 {dimension_numbers = #tpu.dot_dimension_numbers<[1], [0], [0], [1], [0, 0, 1, 1], [], []>} : vector<8x32xf32>, vector<32x32xf32>, vector<8x32xf32> -> vector<8x32xf32>
    %9 = arith.addf %7, %8 : vector<8x32xf32>
    %10 = vector.broadcast %4 : vector<1x32xf32> to vector<8x32xf32>
    %11 = arith.addf %9, %10 : vector<8x32xf32>
    %12 = math.tanh %11 : vector<8x32xf32>
    %13 = tpu.concatenate %12, %6 in 1 : vector<8x32xf32>, vector<8x32xf32> -> vector<8x64xf32>
    %c0_10 = arith.constant 0 : index
    %c0_11 = arith.constant 0 : index
    %c0_12 = arith.constant 0 : index
    %14 = vector.load %arg4[%c0_10, %c0_11, %c0_12] : memref<1x64x32xf32, #tpu.memory_space<vmem>>, vector<1x64x32xf32>
    %15 = vector.shape_cast %14 : vector<1x64x32xf32> to vector<64x32xf32>
    %cst_13 = arith.constant dense<0.000000e+00> : vector<8x32xf32>
    %16 = tpu.matmul %13, %15, %cst_13 {dimension_numbers = #tpu.dot_dimension_numbers<[1], [0], [0], [1], [0, 0, 1, 1], [], []>} : vector<8x64xf32>, vector<64x32xf32>, vector<8x32xf32> -> vector<8x32xf32>
    %c0_14 = arith.constant 0 : index
    %c0_15 = arith.constant 0 : index
    %17 = vector.load %arg5[%c0_14, %c0_15] : memref<1x32xf32, #tpu.memory_space<vmem>>, vector<1x32xf32>
    %18 = vector.broadcast %17 : vector<1x32xf32> to vector<8x32xf32>
    %19 = arith.addf %16, %18 : vector<8x32xf32>
    %20 = math.tanh %19 : vector<8x32xf32>
    %21 = vector.extract_strided_slice %2 {offsets = [0, 32], sizes = [8, 32], strides = [1, 1]} : vector<8x256xf32> to vector<8x32xf32>
    %cst_16 = arith.constant dense<0.000000e+00> : vector<8x32xf32>
    %22 = tpu.matmul %12, %3, %cst_16 {dimension_numbers = #tpu.dot_dimension_numbers<[1], [0], [0], [1], [0, 0, 1, 1], [], []>} : vector<8x32xf32>, vector<32x32xf32>, vector<8x32xf32> -> vector<8x32xf32>
    %23 = arith.addf %21, %22 : vector<8x32xf32>
    %24 = vector.broadcast %4 : vector<1x32xf32> to vector<8x32xf32>
    %25 = arith.addf %23, %24 : vector<8x32xf32>
    %26 = math.tanh %25 : vector<8x32xf32>
    %27 = tpu.concatenate %26, %20 in 1 : vector<8x32xf32>, vector<8x32xf32> -> vector<8x64xf32>
    %c0_17 = arith.constant 0 : index
    %c0_18 = arith.constant 0 : index
    %c0_19 = arith.constant 0 : index
    %28 = vector.load %arg4[%c0_17, %c0_18, %c0_19] : memref<1x64x32xf32, #tpu.memory_space<vmem>>, vector<1x64x32xf32>
    %29 = vector.shape_cast %28 : vector<1x64x32xf32> to vector<64x32xf32>
    %cst_20 = arith.constant dense<0.000000e+00> : vector<8x32xf32>
    %30 = tpu.matmul %27, %29, %cst_20 {dimension_numbers = #tpu.dot_dimension_numbers<[1], [0], [0], [1], [0, 0, 1, 1], [], []>} : vector<8x64xf32>, vector<64x32xf32>, vector<8x32xf32> -> vector<8x32xf32>
    %c0_21 = arith.constant 0 : index
    %c0_22 = arith.constant 0 : index
    %31 = vector.load %arg5[%c0_21, %c0_22] : memref<1x32xf32, #tpu.memory_space<vmem>>, vector<1x32xf32>
    %32 = vector.broadcast %31 : vector<1x32xf32> to vector<8x32xf32>
    %33 = arith.addf %30, %32 : vector<8x32xf32>
    %34 = math.tanh %33 : vector<8x32xf32>
    %35 = vector.extract_strided_slice %2 {offsets = [0, 64], sizes = [8, 32], strides = [1, 1]} : vector<8x256xf32> to vector<8x32xf32>
    %cst_23 = arith.constant dense<0.000000e+00> : vector<8x32xf32>
    %36 = tpu.matmul %26, %3, %cst_23 {dimension_numbers = #tpu.dot_dimension_numbers<[1], [0], [0], [1], [0, 0, 1, 1], [], []>} : vector<8x32xf32>, vector<32x32xf32>, vector<8x32xf32> -> vector<8x32xf32>
    %37 = arith.addf %35, %36 : vector<8x32xf32>
    %38 = vector.broadcast %4 : vector<1x32xf32> to vector<8x32xf32>
    %39 = arith.addf %37, %38 : vector<8x32xf32>
    %40 = math.tanh %39 : vector<8x32xf32>
    %41 = tpu.concatenate %40, %34 in 1 : vector<8x32xf32>, vector<8x32xf32> -> vector<8x64xf32>
    %c0_24 = arith.constant 0 : index
    %c0_25 = arith.constant 0 : index
    %c0_26 = arith.constant 0 : index
    %42 = vector.load %arg4[%c0_24, %c0_25, %c0_26] : memref<1x64x32xf32, #tpu.memory_space<vmem>>, vector<1x64x32xf32>
    %43 = vector.shape_cast %42 : vector<1x64x32xf32> to vector<64x32xf32>
    %cst_27 = arith.constant dense<0.000000e+00> : vector<8x32xf32>
    %44 = tpu.matmul %41, %43, %cst_27 {dimension_numbers = #tpu.dot_dimension_numbers<[1], [0], [0], [1], [0, 0, 1, 1], [], []>} : vector<8x64xf32>, vector<64x32xf32>, vector<8x32xf32> -> vector<8x32xf32>
    %c0_28 = arith.constant 0 : index
    %c0_29 = arith.constant 0 : index
    %45 = vector.load %arg5[%c0_28, %c0_29] : memref<1x32xf32, #tpu.memory_space<vmem>>, vector<1x32xf32>
    %46 = vector.broadcast %45 : vector<1x32xf32> to vector<8x32xf32>
    %47 = arith.addf %44, %46 : vector<8x32xf32>
    %48 = math.tanh %47 : vector<8x32xf32>
    %49 = vector.extract_strided_slice %2 {offsets = [0, 96], sizes = [8, 32], strides = [1, 1]} : vector<8x256xf32> to vector<8x32xf32>
    %cst_30 = arith.constant dense<0.000000e+00> : vector<8x32xf32>
    %50 = tpu.matmul %40, %3, %cst_30 {dimension_numbers = #tpu.dot_dimension_numbers<[1], [0], [0], [1], [0, 0, 1, 1], [], []>} : vector<8x32xf32>, vector<32x32xf32>, vector<8x32xf32> -> vector<8x32xf32>
    %51 = arith.addf %49, %50 : vector<8x32xf32>
    %52 = vector.broadcast %4 : vector<1x32xf32> to vector<8x32xf32>
    %53 = arith.addf %51, %52 : vector<8x32xf32>
    %54 = math.tanh %53 : vector<8x32xf32>
    %55 = tpu.concatenate %54, %48 in 1 : vector<8x32xf32>, vector<8x32xf32> -> vector<8x64xf32>
    %c0_31 = arith.constant 0 : index
    %c0_32 = arith.constant 0 : index
    %c0_33 = arith.constant 0 : index
    %56 = vector.load %arg4[%c0_31, %c0_32, %c0_33] : memref<1x64x32xf32, #tpu.memory_space<vmem>>, vector<1x64x32xf32>
    %57 = vector.shape_cast %56 : vector<1x64x32xf32> to vector<64x32xf32>
    %cst_34 = arith.constant dense<0.000000e+00> : vector<8x32xf32>
    %58 = tpu.matmul %55, %57, %cst_34 {dimension_numbers = #tpu.dot_dimension_numbers<[1], [0], [0], [1], [0, 0, 1, 1], [], []>} : vector<8x64xf32>, vector<64x32xf32>, vector<8x32xf32> -> vector<8x32xf32>
    %c0_35 = arith.constant 0 : index
    %c0_36 = arith.constant 0 : index
    %59 = vector.load %arg5[%c0_35, %c0_36] : memref<1x32xf32, #tpu.memory_space<vmem>>, vector<1x32xf32>
    %60 = vector.broadcast %59 : vector<1x32xf32> to vector<8x32xf32>
    %61 = arith.addf %58, %60 : vector<8x32xf32>
    %62 = math.tanh %61 : vector<8x32xf32>
    %63 = vector.extract_strided_slice %2 {offsets = [0, 128], sizes = [8, 32], strides = [1, 1]} : vector<8x256xf32> to vector<8x32xf32>
    %cst_37 = arith.constant dense<0.000000e+00> : vector<8x32xf32>
    %64 = tpu.matmul %54, %3, %cst_37 {dimension_numbers = #tpu.dot_dimension_numbers<[1], [0], [0], [1], [0, 0, 1, 1], [], []>} : vector<8x32xf32>, vector<32x32xf32>, vector<8x32xf32> -> vector<8x32xf32>
    %65 = arith.addf %63, %64 : vector<8x32xf32>
    %66 = vector.broadcast %4 : vector<1x32xf32> to vector<8x32xf32>
    %67 = arith.addf %65, %66 : vector<8x32xf32>
    %68 = math.tanh %67 : vector<8x32xf32>
    %69 = tpu.concatenate %68, %62 in 1 : vector<8x32xf32>, vector<8x32xf32> -> vector<8x64xf32>
    %c0_38 = arith.constant 0 : index
    %c0_39 = arith.constant 0 : index
    %c0_40 = arith.constant 0 : index
    %70 = vector.load %arg4[%c0_38, %c0_39, %c0_40] : memref<1x64x32xf32, #tpu.memory_space<vmem>>, vector<1x64x32xf32>
    %71 = vector.shape_cast %70 : vector<1x64x32xf32> to vector<64x32xf32>
    %cst_41 = arith.constant dense<0.000000e+00> : vector<8x32xf32>
    %72 = tpu.matmul %69, %71, %cst_41 {dimension_numbers = #tpu.dot_dimension_numbers<[1], [0], [0], [1], [0, 0, 1, 1], [], []>} : vector<8x64xf32>, vector<64x32xf32>, vector<8x32xf32> -> vector<8x32xf32>
    %c0_42 = arith.constant 0 : index
    %c0_43 = arith.constant 0 : index
    %73 = vector.load %arg5[%c0_42, %c0_43] : memref<1x32xf32, #tpu.memory_space<vmem>>, vector<1x32xf32>
    %74 = vector.broadcast %73 : vector<1x32xf32> to vector<8x32xf32>
    %75 = arith.addf %72, %74 : vector<8x32xf32>
    %76 = math.tanh %75 : vector<8x32xf32>
    %77 = vector.extract_strided_slice %2 {offsets = [0, 160], sizes = [8, 32], strides = [1, 1]} : vector<8x256xf32> to vector<8x32xf32>
    %cst_44 = arith.constant dense<0.000000e+00> : vector<8x32xf32>
    %78 = tpu.matmul %68, %3, %cst_44 {dimension_numbers = #tpu.dot_dimension_numbers<[1], [0], [0], [1], [0, 0, 1, 1], [], []>} : vector<8x32xf32>, vector<32x32xf32>, vector<8x32xf32> -> vector<8x32xf32>
    %79 = arith.addf %77, %78 : vector<8x32xf32>
    %80 = vector.broadcast %4 : vector<1x32xf32> to vector<8x32xf32>
    %81 = arith.addf %79, %80 : vector<8x32xf32>
    %82 = math.tanh %81 : vector<8x32xf32>
    %83 = tpu.concatenate %82, %76 in 1 : vector<8x32xf32>, vector<8x32xf32> -> vector<8x64xf32>
    %c0_45 = arith.constant 0 : index
    %c0_46 = arith.constant 0 : index
    %c0_47 = arith.constant 0 : index
    %84 = vector.load %arg4[%c0_45, %c0_46, %c0_47] : memref<1x64x32xf32, #tpu.memory_space<vmem>>, vector<1x64x32xf32>
    %85 = vector.shape_cast %84 : vector<1x64x32xf32> to vector<64x32xf32>
    %cst_48 = arith.constant dense<0.000000e+00> : vector<8x32xf32>
    %86 = tpu.matmul %83, %85, %cst_48 {dimension_numbers = #tpu.dot_dimension_numbers<[1], [0], [0], [1], [0, 0, 1, 1], [], []>} : vector<8x64xf32>, vector<64x32xf32>, vector<8x32xf32> -> vector<8x32xf32>
    %c0_49 = arith.constant 0 : index
    %c0_50 = arith.constant 0 : index
    %87 = vector.load %arg5[%c0_49, %c0_50] : memref<1x32xf32, #tpu.memory_space<vmem>>, vector<1x32xf32>
    %88 = vector.broadcast %87 : vector<1x32xf32> to vector<8x32xf32>
    %89 = arith.addf %86, %88 : vector<8x32xf32>
    %90 = math.tanh %89 : vector<8x32xf32>
    %91 = vector.extract_strided_slice %2 {offsets = [0, 192], sizes = [8, 32], strides = [1, 1]} : vector<8x256xf32> to vector<8x32xf32>
    %cst_51 = arith.constant dense<0.000000e+00> : vector<8x32xf32>
    %92 = tpu.matmul %82, %3, %cst_51 {dimension_numbers = #tpu.dot_dimension_numbers<[1], [0], [0], [1], [0, 0, 1, 1], [], []>} : vector<8x32xf32>, vector<32x32xf32>, vector<8x32xf32> -> vector<8x32xf32>
    %93 = arith.addf %91, %92 : vector<8x32xf32>
    %94 = vector.broadcast %4 : vector<1x32xf32> to vector<8x32xf32>
    %95 = arith.addf %93, %94 : vector<8x32xf32>
    %96 = math.tanh %95 : vector<8x32xf32>
    %97 = tpu.concatenate %96, %90 in 1 : vector<8x32xf32>, vector<8x32xf32> -> vector<8x64xf32>
    %c0_52 = arith.constant 0 : index
    %c0_53 = arith.constant 0 : index
    %c0_54 = arith.constant 0 : index
    %98 = vector.load %arg4[%c0_52, %c0_53, %c0_54] : memref<1x64x32xf32, #tpu.memory_space<vmem>>, vector<1x64x32xf32>
    %99 = vector.shape_cast %98 : vector<1x64x32xf32> to vector<64x32xf32>
    %cst_55 = arith.constant dense<0.000000e+00> : vector<8x32xf32>
    %100 = tpu.matmul %97, %99, %cst_55 {dimension_numbers = #tpu.dot_dimension_numbers<[1], [0], [0], [1], [0, 0, 1, 1], [], []>} : vector<8x64xf32>, vector<64x32xf32>, vector<8x32xf32> -> vector<8x32xf32>
    %c0_56 = arith.constant 0 : index
    %c0_57 = arith.constant 0 : index
    %101 = vector.load %arg5[%c0_56, %c0_57] : memref<1x32xf32, #tpu.memory_space<vmem>>, vector<1x32xf32>
    %102 = vector.broadcast %101 : vector<1x32xf32> to vector<8x32xf32>
    %103 = arith.addf %100, %102 : vector<8x32xf32>
    %104 = math.tanh %103 : vector<8x32xf32>
    %105 = vector.extract_strided_slice %2 {offsets = [0, 224], sizes = [8, 32], strides = [1, 1]} : vector<8x256xf32> to vector<8x32xf32>
    %cst_58 = arith.constant dense<0.000000e+00> : vector<8x32xf32>
    %106 = tpu.matmul %96, %3, %cst_58 {dimension_numbers = #tpu.dot_dimension_numbers<[1], [0], [0], [1], [0, 0, 1, 1], [], []>} : vector<8x32xf32>, vector<32x32xf32>, vector<8x32xf32> -> vector<8x32xf32>
    %107 = arith.addf %105, %106 : vector<8x32xf32>
    %108 = vector.broadcast %4 : vector<1x32xf32> to vector<8x32xf32>
    %109 = arith.addf %107, %108 : vector<8x32xf32>
    %110 = math.tanh %109 : vector<8x32xf32>
    %111 = tpu.concatenate %110, %104 in 1 : vector<8x32xf32>, vector<8x32xf32> -> vector<8x64xf32>
    %c0_59 = arith.constant 0 : index
    %c0_60 = arith.constant 0 : index
    %c0_61 = arith.constant 0 : index
    %112 = vector.load %arg4[%c0_59, %c0_60, %c0_61] : memref<1x64x32xf32, #tpu.memory_space<vmem>>, vector<1x64x32xf32>
    %113 = vector.shape_cast %112 : vector<1x64x32xf32> to vector<64x32xf32>
    %cst_62 = arith.constant dense<0.000000e+00> : vector<8x32xf32>
    %114 = tpu.matmul %111, %113, %cst_62 {dimension_numbers = #tpu.dot_dimension_numbers<[1], [0], [0], [1], [0, 0, 1, 1], [], []>} : vector<8x64xf32>, vector<64x32xf32>, vector<8x32xf32> -> vector<8x32xf32>
    %c0_63 = arith.constant 0 : index
    %c0_64 = arith.constant 0 : index
    %115 = vector.load %arg5[%c0_63, %c0_64] : memref<1x32xf32, #tpu.memory_space<vmem>>, vector<1x32xf32>
    %116 = vector.broadcast %115 : vector<1x32xf32> to vector<8x32xf32>
    %117 = arith.addf %114, %116 : vector<8x32xf32>
    %118 = math.tanh %117 : vector<8x32xf32>
    %c0_65 = arith.constant 0 : index
    %c0_66 = arith.constant 0 : index
    %119 = vector.load %arg6[%c0_65, %c0_66] : memref<32x2xf32, #tpu.memory_space<vmem>>, vector<32x2xf32>
    %cst_67 = arith.constant dense<0.000000e+00> : vector<8x2xf32>
    %120 = tpu.matmul %118, %119, %cst_67 {dimension_numbers = #tpu.dot_dimension_numbers<[1], [0], [0], [1], [0, 0, 1, 1], [], []>} : vector<8x32xf32>, vector<32x2xf32>, vector<8x2xf32> -> vector<8x2xf32>
    %c0_68 = arith.constant 0 : index
    %c0_69 = arith.constant 0 : index
    %121 = vector.load %arg7[%c0_68, %c0_69] : memref<1x2xf32, #tpu.memory_space<vmem>>, vector<1x2xf32>
    %122 = vector.broadcast %121 : vector<1x2xf32> to vector<8x2xf32>
    %123 = arith.addf %120, %122 : vector<8x2xf32>
    %c0_70 = arith.constant 0 : index
    %c0_71 = arith.constant 0 : index
    %124 = vector.load %arg8[%c0_70, %c0_71] : memref<8x2xf32, #tpu.memory_space<vmem>>, vector<8x2xf32>
    tpu.vector_store %arg8[%c0_70, %c0_71], %123 {strides = array<i32>} : memref<8x2xf32, #tpu.memory_space<vmem>>, vector<8x2xf32>,
    return
  }
}

</mosaic_0001>

<llo_original>
// kernel: tpu_custom_call.1
$region0: #{tpu_custom_call.1}
  #allocation0 [shape = 'u32[]', space=smem, size = 0x4, offset = 0x4, fixed_abs, tag = 'smem constant byte address 0x4 - core index']
  #allocation1 [shape = 'u32[144,128]{1,0:T(1,128)}', space=vmem, size = 0x12000, scoped, tag = 'internal scratch']
  %s0 = inlined_call_operand.vmem [shape: f32[8,32], index: 0, kind: input, shape index: {}]
  %s1 = inlined_call_operand.vmem [shape: f32[32,256], index: 1, kind: input, shape index: {}]
  %s2 = inlined_call_operand.vmem [shape: f32[32,32], index: 2, kind: input, shape index: {}]
  %s3 = inlined_call_operand.vmem [shape: f32[1,32], index: 3, kind: input, shape index: {}]
  %s4 = inlined_call_operand.vmem [shape: f32[1,64,32], index: 4, kind: input, shape index: {}]
  %s5 = inlined_call_operand.hbm [shape: f32[1,32], index: 5, kind: input, shape index: {}]
  %s6 = inlined_call_operand.vmem [shape: f32[32,2], index: 6, kind: input, shape index: {}]
  %s7 = inlined_call_operand.vmem [shape: f32[1,2], index: 7, kind: input, shape index: {}]
  %s8 = inlined_call_operand.vmem [shape: f32[8,2], index: 8, kind: output, shape index: {}]
  %s9 = sld [smem:[#allocation0]]
  $region46: #{tpu_custom_call.1} parent=0
    _
  %s11 = ssub.s32 1, %s9
  %s12 = scalar_select 0, %s11, %s9
  $region1: #{tpu_custom_call.1} parent=0
    #allocation2 [shape = 'u8[512]{0}', space=vmem, size = 0x400, scoped, tag = 'input window, operand 5, single buffered']
    #allocation3 [shape = 's32[1]{0}', space=sflag, size = 0x4, scoped, tag = 'scoped memory for tpu_custom_call.1']
    %13 = vsyncpa [#allocation3], 0
    // Predicated region
    $region2: #{tpu_custom_call.1} parent=1 // pred_check
      _
    $region3: #{tpu_custom_call.1} parent=1 // pred_check_branch
      %15 = sbr.rel (0) target = $region5
    $region4: #{tpu_custom_call.1} parent=1 // pred_region
      _
    $region5: #{tpu_custom_call.1} parent=1 // pred_fallthru
      _
    // Predicated region
    $region6: #{tpu_custom_call.1} parent=1 // pred_check
      _
    $region7: #{tpu_custom_call.1} parent=1 // pred_check_branch
      %17 = sbr.rel (0) target = $region9
    $region8: #{tpu_custom_call.1} parent=1 // pred_region
      _
    $region9: #{tpu_custom_call.1} parent=1 // pred_fallthru
      _
    // Predicated region
    $region10: #{tpu_custom_call.1} parent=1 // pred_check
      _
    $region11: #{tpu_custom_call.1} parent=1 // pred_check_branch
      %19 = sbr.rel (0) target = $region13
    $region12: #{tpu_custom_call.1} parent=1 // pred_region
      _
    $region13: #{tpu_custom_call.1} parent=1 // pred_fallthru
      _
    // Predicated region
    $region14: #{tpu_custom_call.1} parent=1 // pred_check
      _
    $region15: #{tpu_custom_call.1} parent=1 // pred_check_branch
      %21 = sbr.rel (0) target = $region17
    $region16: #{tpu_custom_call.1} parent=1 // pred_region
      _
    $region17: #{tpu_custom_call.1} parent=1 // pred_fallthru
      _
    // Predicated region
    $region18: #{tpu_custom_call.1} parent=1 // pred_check
      _
    $region19: #{tpu_custom_call.1} parent=1 // pred_check_branch
      %23 = sbr.rel (0) target = $region21
    $region20: #{tpu_custom_call.1} parent=1 // pred_region
      _
    $region21: #{tpu_custom_call.1} parent=1 // pred_fallthru
      _
    // Predicated region
    $region22: #{tpu_custom_call.1} parent=1 // pred_check
      _
    $region23: #{tpu_custom_call.1} parent=1 // pred_check_branch
      %25 = sbr.rel (0) target = $region25
    $region24: #{tpu_custom_call.1} parent=1 // pred_region
      %s27 = ssub.s32 16, 16
      %28 = vsyncadd [#allocation3], %s27
      %s30 = sshll.u32 [#allocation2], 4
      %s31 = int_to_ptr.vmem [resolvable:$true] %s30
      %33 = dma.hbm_to_vmem [thread:$0]  %s5, 16, %s31, [#allocation3]
    $region25: #{tpu_custom_call.1} parent=1 // pred_fallthru
      _
    // Predicated region
    $region26: #{tpu_custom_call.1} parent=1 // pred_check
      _
    $region27: #{tpu_custom_call.1} parent=1 // pred_check_branch
      %35 = sbr.rel (0) target = $region29
    $region28: #{tpu_custom_call.1} parent=1 // pred_region
      _
    $region29: #{tpu_custom_call.1} parent=1 // pred_fallthru
      _
    // Predicated region
    $region30: #{tpu_custom_call.1} parent=1 // pred_check
      _
    $region31: #{tpu_custom_call.1} parent=1 // pred_check_branch
      %37 = sbr.rel (0) target = $region33
    $region32: #{tpu_custom_call.1} parent=1 // pred_region
      _
    $region33: #{tpu_custom_call.1} parent=1 // pred_fallthru
      _
    // Predicated region
    $region34: #{tpu_custom_call.1} parent=1 // pred_check
      _
    $region35: #{tpu_custom_call.1} parent=1 // pred_check_branch
      %39 = sbr.rel (0) target = $region37
    $region36: #{tpu_custom_call.1} parent=1 // pred_region
      %40 = dma.done [#allocation3], 16
    $region37: #{tpu_custom_call.1} parent=1 // pred_fallthru
      _
    %v41 = vld [vmem:[%s0] sm:$0xff]
    %v42 = vld [vmem:[%s1] sm:$0xff]
    %v43 = vld [vmem:[%s1 + $0x8] sm:$0xff]
    %v44 = vld [vmem:[%s1 + $0x10] sm:$0xff]
    %v45 = vld [vmem:[%s1 + $0x18] sm:$0xff]
    %v46 = vld [vmem:[%s1 + $0x20] sm:$0xff]
    %v47 = vld [vmem:[%s1 + $0x28] sm:$0xff]
    %v48 = vld [vmem:[%s1 + $0x30] sm:$0xff]
    %v49 = vld [vmem:[%s1 + $0x38] sm:$0xff]
    %vm50 = vcmask 261120
    %v52 = vsel %vm50, %v41, 0
    %54 = vmatprep.subr.mxu0 0.0
    %55 = vmatpush1.msra.mxu0 0.0
    %56 = vmatprep.subr.mxu0 0.0
    %57 = vmatpush1.msra.mxu0 0.0
    %58 = vmatprep.subr.mxu0 0.0
    %59 = vmatpush1.msra.mxu0 0.0
    %60 = vmatprep.subr.mxu0 0.0
    %61 = vmatpush1.msra.mxu0 0.0
    %62 = vmatprep.subr.mxu0 0.0
    %63 = vmatpush1.msra.mxu0 0.0
    %64 = vmatprep.subr.mxu0 0.0
    %65 = vmatpush1.msra.mxu0 0.0
    %66 = vmatprep.subr.mxu0 0.0
    %67 = vmatpush1.msra.mxu0 0.0
    %68 = vmatprep.subr.mxu0 0.0
    %69 = vmatpush1.msra.mxu0 0.0
    %70 = vmatprep.subr.mxu0 0.0
    %71 = vmatpush1.msra.mxu0 0.0
    %72 = vmatprep.subr.mxu0 0.0
    %73 = vmatpush1.msra.mxu0 0.0
    %74 = vmatprep.subr.mxu0 0.0
    %75 = vmatpush1.msra.mxu0 0.0
    %76 = vmatprep.subr.mxu0 0.0
    %77 = vmatpush1.msra.mxu0 0.0
    %78 = vmatprep.subr.mxu0 %v49
    %79 = vmatpush1.msra.mxu0 %v48
    %80 = vmatprep.subr.mxu0 %v47
    %81 = vmatpush1.msra.mxu0 %v46
    %82 = vmatprep.subr.mxu0 %v45
    %83 = vmatpush1.msra.mxu0 %v44
    %84 = vmatprep.subr.mxu0 %v43
    %85 = vmatpush1.msra.mxu0 %v42
    %86 = vmatprep.subr.mxu0 0.0
    %87 = vmatpush2.msra.mxu0 0.0
    %88 = vmatprep.subr.mxu0 0.0
    %89 = vmatpush2.msra.mxu0 0.0
    %90 = vmatprep.subr.mxu0 0.0
    %91 = vmatpush2.msra.mxu0 0.0
    %92 = vmatprep.subr.mxu0 0.0
    %93 = vmatpush2.msra.mxu0 0.0
    %94 = vmatprep.subr.mxu0 0.0
    %95 = vmatpush2.msra.mxu0 0.0
    %96 = vmatprep.subr.mxu0 0.0
    %97 = vmatpush2.msra.mxu0 0.0
    %98 = vmatprep.subr.mxu0 0.0
    %99 = vmatpush2.msra.mxu0 0.0
    %100 = vmatprep.subr.mxu0 0.0
    %101 = vmatpush2.msra.mxu0 0.0
    %102 = vmatprep.subr.mxu0 0.0
    %103 = vmatpush2.msra.mxu0 0.0
    %104 = vmatprep.subr.mxu0 0.0
    %105 = vmatpush2.msra.mxu0 0.0
    %106 = vmatprep.subr.mxu0 0.0
    %107 = vmatpush2.msra.mxu0 0.0
    %108 = vmatprep.subr.mxu0 0.0
    %109 = vmatpush2.msra.mxu0 0.0
    %110 = vmatprep.subr.mxu0 0.0
    %111 = vmatpush2.msra.mxu0 0.0
    %112 = vmatprep.subr.mxu0 0.0
    %113 = vmatpush2.msra.mxu0 0.0
    %114 = vmatprep.subr.mxu0 0.0
    %115 = vmatpush2.msra.mxu0 0.0
    %116 = vmatprep.subr.mxu0 0.0
    %117 = vmatpush2.msra.mxu0 0.0
    %118 = vmatprep.mubr.f32.mxu0 0.0
    %119 = vmatmul.mubr.f32.gmra.mxu0 %v52
    %v120 = vpop.f32.mrf.mxu0
    %v121 = vadd.f32 0.0, %v120
    %v122 = vpop.f32.mrf.mxu0
    %v123 = vadd.f32 0.0, %v122
    %124 = vdwg.mxu0
    %v125 = vld [vmem:[%s2] sm:$0xff]
    %v126 = vld [vmem:[%s2 + $0x8] sm:$0xff]
    %v127 = vld [vmem:[%s2 + $0x10] sm:$0xff]
    %v128 = vld [vmem:[%s2 + $0x18] sm:$0xff]
    %v129 = vld [vmem:[%s3] sm:$0x1]
    %v131 = vsel %vm50, 0.0, 0
    %133 = vmatprep.subr.mxu0 0.0
    %134 = vmatpush1.msra.mxu0 0.0
    %135 = vmatprep.subr.mxu0 0.0
    %136 = vmatpush1.msra.mxu0 0.0
    %137 = vmatprep.subr.mxu0 0.0
    %138 = vmatpush1.msra.mxu0 0.0
    %139 = vmatprep.subr.mxu0 0.0
    %140 = vmatpush1.msra.mxu0 0.0
    %141 = vmatprep.subr.mxu0 0.0
    %142 = vmatpush1.msra.mxu0 0.0
    %143 = vmatprep.subr.mxu0 0.0
    %144 = vmatpush1.msra.mxu0 0.0
    %145 = vmatprep.subr.mxu0 0.0
    %146 = vmatpush1.msra.mxu0 0.0
    %147 = vmatprep.subr.mxu0 0.0
    %148 = vmatpush1.msra.mxu0 0.0
    %149 = vmatprep.subr.mxu0 0.0
    %150 = vmatpush1.msra.mxu0 0.0
    %151 = vmatprep.subr.mxu0 0.0
    %152 = vmatpush1.msra.mxu0 0.0
    %153 = vmatprep.subr.mxu0 0.0
    %154 = vmatpush1.msra.mxu0 0.0
    %155 = vmatprep.subr.mxu0 0.0
    %156 = vmatpush1.msra.mxu0 0.0
    %157 = vmatprep.subr.mxu0 0.0
    %158 = vmatpush1.msra.mxu0 %v128
    %159 = vmatprep.subr.mxu0 0.0
    %160 = vmatpush1.msra.mxu0 %v127
    %161 = vmatprep.subr.mxu0 0.0
    %162 = vmatpush1.msra.mxu0 %v126
    %163 = vmatprep.subr.mxu0 0.0
    %164 = vmatpush1.msra.mxu0 %v125
    %165 = vmatprep.subr.mxu0 0.0
    %166 = vmatpush2.msra.mxu0 0.0
    %167 = vmatprep.subr.mxu0 0.0
    %168 = vmatpush2.msra.mxu0 0.0
    %169 = vmatprep.subr.mxu0 0.0
    %170 = vmatpush2.msra.mxu0 0.0
    %171 = vmatprep.subr.mxu0 0.0
    %172 = vmatpush2.msra.mxu0 0.0
    %173 = vmatprep.subr.mxu0 0.0
    %174 = vmatpush2.msra.mxu0 0.0
    %175 = vmatprep.subr.mxu0 0.0
    %176 = vmatpush2.msra.mxu0 0.0
    %177 = vmatprep.subr.mxu0 0.0
    %178 = vmatpush2.msra.mxu0 0.0
    %179 = vmatprep.subr.mxu0 0.0
    %180 = vmatpush2.msra.mxu0 0.0
    %181 = vmatprep.subr.mxu0 0.0
    %182 = vmatpush2.msra.mxu0 0.0
    %183 = vmatprep.subr.mxu0 0.0
    %184 = vmatpush2.msra.mxu0 0.0
    %185 = vmatprep.subr.mxu0 0.0
    %186 = vmatpush2.msra.mxu0 0.0
    %187 = vmatprep.subr.mxu0 0.0
    %188 = vmatpush2.msra.mxu0 0.0
    %189 = vmatprep.subr.mxu0 0.0
    %190 = vmatpush2.msra.mxu0 0.0
    %191 = vmatprep.subr.mxu0 0.0
    %192 = vmatpush2.msra.mxu0 0.0
    %193 = vmatprep.subr.mxu0 0.0
    %194 = vmatpush2.msra.mxu0 0.0
    %195 = vmatprep.subr.mxu0 0.0
    %196 = vmatpush2.msra.mxu0 0.0
    %197 = vmatprep.mubr.f32.mxu0 0.0
    %198 = vmatmul.mubr.f32.gmra.mxu0 %v131
    %v199 = vpop.f32.mrf.mxu0
    %v200 = vadd.f32 0.0, %v199
    %v201 = vpop.f32.mrf.mxu0
    %202 = vdwg.mxu0
    %v203 = vadd.f32 %v121, %v200
    %v205 = vlaneseq
    %v206 = vshrl.u32 %v205, 7
    %v207 = vsub.s32 0, %v206
    %v208 = vrot.slane %v129, %v207
    %v210 = vadd.f32 %v203, %v208
    %v211 = vtanh.pop %v210
    %v212 = vsel %vm50, %v211, 0.0
    %v213 = vld [vmem:[%s4] sm:$0xff]
    %v214 = vld [vmem:[%s4 + $0x8] sm:$0xff]
    %v215 = vld [vmem:[%s4 + $0x10] sm:$0xff]
    %v216 = vld [vmem:[%s4 + $0x18] sm:$0xff]
    %v217 = vld [vmem:[%s4 + $0x20] sm:$0xff]
    %v218 = vld [vmem:[%s4 + $0x28] sm:$0xff]
    %v219 = vld [vmem:[%s4 + $0x30] sm:$0xff]
    %v220 = vld [vmem:[%s4 + $0x38] sm:$0xff]
    %v221 = vld [vmem:[#allocation2] sm:$0x1]
    %v223 = vlaneseq
    %v224 = vshrl.u32 %v223, 7
    %v225 = vsub.s32 0, %v224
    %v226 = vrot.slane %v221, %v225
    %vm228 = vcmask 523264
    %v230 = vsel %vm228, %v212, 0
    %232 = vmatprep.subr.mxu0 0.0
    %233 = vmatpush1.msra.mxu0 0.0
    %234 = vmatprep.subr.mxu0 0.0
    %235 = vmatpush1.msra.mxu0 0.0
    %236 = vmatprep.subr.mxu0 0.0
    %237 = vmatpush1.msra.mxu0 0.0
    %238 = vmatprep.subr.mxu0 0.0
    %239 = vmatpush1.msra.mxu0 0.0
    %240 = vmatprep.subr.mxu0 0.0
    %241 = vmatpush1.msra.mxu0 0.0
    %242 = vmatprep.subr.mxu0 0.0
    %243 = vmatpush1.msra.mxu0 0.0
    %244 = vmatprep.subr.mxu0 0.0
    %245 = vmatpush1.msra.mxu0 0.0
    %246 = vmatprep.subr.mxu0 0.0
    %247 = vmatpush1.msra.mxu0 0.0
    %248 = vmatprep.subr.mxu0 0.0
    %249 = vmatpush1.msra.mxu0 %v220
    %250 = vmatprep.subr.mxu0 0.0
    %251 = vmatpush1.msra.mxu0 %v219
    %252 = vmatprep.subr.mxu0 0.0
    %253 = vmatpush1.msra.mxu0 %v218
    %254 = vmatprep.subr.mxu0 0.0
    %255 = vmatpush1.msra.mxu0 %v217
    %256 = vmatprep.subr.mxu0 0.0
    %257 = vmatpush1.msra.mxu0 %v216
    %258 = vmatprep.subr.mxu0 0.0
    %259 = vmatpush1.msra.mxu0 %v215
    %260 = vmatprep.subr.mxu0 0.0
    %261 = vmatpush1.msra.mxu0 %v214
    %262 = vmatprep.subr.mxu0 0.0
    %263 = vmatpush1.msra.mxu0 %v213
    %264 = vmatprep.subr.mxu0 0.0
    %265 = vmatpush2.msra.mxu0 0.0
    %266 = vmatprep.subr.mxu0 0.0
    %267 = vmatpush2.msra.mxu0 0.0
    %268 = vmatprep.subr.mxu0 0.0
    %269 = vmatpush2.msra.mxu0 0.0
    %270 = vmatprep.subr.mxu0 0.0
    %271 = vmatpush2.msra.mxu0 0.0
    %272 = vmatprep.subr.mxu0 0.0
    %273 = vmatpush2.msra.mxu0 0.0
    %274 = vmatprep.subr.mxu0 0.0
    %275 = vmatpush2.msra.mxu0 0.0
    %276 = vmatprep.subr.mxu0 0.0
    %277 = vmatpush2.msra.mxu0 0.0
    %278 = vmatprep.subr.mxu0 0.0
    %279 = vmatpush2.msra.mxu0 0.0
    %280 = vmatprep.subr.mxu0 0.0
    %281 = vmatpush2.msra.mxu0 0.0
    %282 = vmatprep.subr.mxu0 0.0
    %283 = vmatpush2.msra.mxu0 0.0
    %284 = vmatprep.subr.mxu0 0.0
    %285 = vmatpush2.msra.mxu0 0.0
    %286 = vmatprep.subr.mxu0 0.0
    %287 = vmatpush2.msra.mxu0 0.0
    %288 = vmatprep.subr.mxu0 0.0
    %289 = vmatpush2.msra.mxu0 0.0
    %290 = vmatprep.subr.mxu0 0.0
    %291 = vmatpush2.msra.mxu0 0.0
    %292 = vmatprep.subr.mxu0 0.0
    %293 = vmatpush2.msra.mxu0 0.0
    %294 = vmatprep.subr.mxu0 0.0
    %295 = vmatpush2.msra.mxu0 0.0
    %296 = vmatprep.mubr.f32.mxu0 0.0
    %297 = vmatmul.mubr.f32.gmra.mxu0 %v230
    %v298 = vpop.f32.mrf.mxu0
    %v299 = vadd.f32 %v226, %v298
    %v300 = vpop.f32.mrf.mxu0
    %301 = vdwg.mxu0
    %v302 = vtanh.pop %v299
    %v304 = vsel %vm50, %v211, 0
    %306 = vmatprep.subr.mxu0 0.0
    %307 = vmatpush1.msra.mxu0 0.0
    %308 = vmatprep.subr.mxu0 0.0
    %309 = vmatpush1.msra.mxu0 0.0
    %310 = vmatprep.subr.mxu0 0.0
    %311 = vmatpush1.msra.mxu0 0.0
    %312 = vmatprep.subr.mxu0 0.0
    %313 = vmatpush1.msra.mxu0 0.0
    %314 = vmatprep.subr.mxu0 0.0
    %315 = vmatpush1.msra.mxu0 0.0
    %316 = vmatprep.subr.mxu0 0.0
    %317 = vmatpush1.msra.mxu0 0.0
    %318 = vmatprep.subr.mxu0 0.0
    %319 = vmatpush1.msra.mxu0 0.0
    %320 = vmatprep.subr.mxu0 0.0
    %321 = vmatpush1.msra.mxu0 0.0
    %322 = vmatprep.subr.mxu0 0.0
    %323 = vmatpush1.msra.mxu0 0.0
    %324 = vmatprep.subr.mxu0 0.0
    %325 = vmatpush1.msra.mxu0 0.0
    %326 = vmatprep.subr.mxu0 0.0
    %327 = vmatpush1.msra.mxu0 0.0
    %328 = vmatprep.subr.mxu0 0.0
    %329 = vmatpush1.msra.mxu0 0.0
    %330 = vmatprep.subr.mxu0 0.0
    %331 = vmatpush1.msra.mxu0 %v128
    %332 = vmatprep.subr.mxu0 0.0
    %333 = vmatpush1.msra.mxu0 %v127
    %334 = vmatprep.subr.mxu0 0.0
    %335 = vmatpush1.msra.mxu0 %v126
    %336 = vmatprep.subr.mxu0 0.0
    %337 = vmatpush1.msra.mxu0 %v125
    %338 = vmatprep.subr.mxu0 0.0
    %339 = vmatpush2.msra.mxu0 0.0
    %340 = vmatprep.subr.mxu0 0.0
    %341 = vmatpush2.msra.mxu0 0.0
    %342 = vmatprep.subr.mxu0 0.0
    %343 = vmatpush2.msra.mxu0 0.0
    %344 = vmatprep.subr.mxu0 0.0
    %345 = vmatpush2.msra.mxu0 0.0
    %346 = vmatprep.subr.mxu0 0.0
    %347 = vmatpush2.msra.mxu0 0.0
    %348 = vmatprep.subr.mxu0 0.0
    %349 = vmatpush2.msra.mxu0 0.0
    %350 = vmatprep.subr.mxu0 0.0
    %351 = vmatpush2.msra.mxu0 0.0
    %352 = vmatprep.subr.mxu0 0.0
    %353 = vmatpush2.msra.mxu0 0.0
    %354 = vmatprep.subr.mxu0 0.0
    %355 = vmatpush2.msra.mxu0 0.0
    %356 = vmatprep.subr.mxu0 0.0
    %357 = vmatpush2.msra.mxu0 0.0
    %358 = vmatprep.subr.mxu0 0.0
    %359 = vmatpush2.msra.mxu0 0.0
    %360 = vmatprep.subr.mxu0 0.0
    %361 = vmatpush2.msra.mxu0 0.0
    %362 = vmatprep.subr.mxu0 0.0
    %363 = vmatpush2.msra.mxu0 0.0
    %364 = vmatprep.subr.mxu0 0.0
    %365 = vmatpush2.msra.mxu0 0.0
    %366 = vmatprep.subr.mxu0 0.0
    %367 = vmatpush2.msra.mxu0 0.0
    %368 = vmatprep.subr.mxu0 0.0
    %369 = vmatpush2.msra.mxu0 0.0
    %370 = vmatprep.mubr.f32.mxu0 0.0
    %371 = vmatmul.mubr.f32.gmra.mxu0 %v304
    %v372 = vpop.f32.mrf.mxu0
    %v373 = vadd.f32 0.0, %v372
    %v374 = vpop.f32.mrf.mxu0
    %375 = vdwg.mxu0
    %377 = vrot.lane.b32.xlu0 %v373, 32
    %v378 = vpop.permute.xlu0 %377
    %v380 = vadd.f32 %v121, %v378
    %381 = vrot.lane.b32.xlu0 %v208, 32
    %v382 = vpop.permute.xlu0 %381
    %v384 = vadd.f32 %v380, %v382
    %v385 = vtanh.pop %v384
    %387 = vrot.lane.b32.xlu0 %v385, 96
    %v388 = vpop.permute.xlu0 %387
    %391 = vrot.lane.b32.xlu0 %v302, 32
    %v392 = vpop.permute.xlu0 %391
    %v394 = vsel %vm50, %v388, %v392
    %v396 = vsel %vm228, %v394, 0
    %398 = vmatprep.subr.mxu0 0.0
    %399 = vmatpush1.msra.mxu0 0.0
    %400 = vmatprep.subr.mxu0 0.0
    %401 = vmatpush1.msra.mxu0 0.0
    %402 = vmatprep.subr.mxu0 0.0
    %403 = vmatpush1.msra.mxu0 0.0
    %404 = vmatprep.subr.mxu0 0.0
    %405 = vmatpush1.msra.mxu0 0.0
    %406 = vmatprep.subr.mxu0 0.0
    %407 = vmatpush1.msra.mxu0 0.0
    %408 = vmatprep.subr.mxu0 0.0
    %409 = vmatpush1.msra.mxu0 0.0
    %410 = vmatprep.subr.mxu0 0.0
    %411 = vmatpush1.msra.mxu0 0.0
    %412 = vmatprep.subr.mxu0 0.0
    %413 = vmatpush1.msra.mxu0 0.0
    %414 = vmatprep.subr.mxu0 0.0
    %415 = vmatpush1.msra.mxu0 %v220
    %416 = vmatprep.subr.mxu0 0.0
    %417 = vmatpush1.msra.mxu0 %v219
    %418 = vmatprep.subr.mxu0 0.0
    %419 = vmatpush1.msra.mxu0 %v218
    %420 = vmatprep.subr.mxu0 0.0
    %421 = vmatpush1.msra.mxu0 %v217
    %422 = vmatprep.subr.mxu0 0.0
    %423 = vmatpush1.msra.mxu0 %v216
    %424 = vmatprep.subr.mxu0 0.0
    %425 = vmatpush1.msra.mxu0 %v215
    %426 = vmatprep.subr.mxu0 0.0
    %427 = vmatpush1.msra.mxu0 %v214
    %428 = vmatprep.subr.mxu0 0.0
    %429 = vmatpush1.msra.mxu0 %v213
    %430 = vmatprep.subr.mxu0 0.0
    %431 = vmatpush2.msra.mxu0 0.0
    %432 = vmatprep.subr.mxu0 0.0
    %433 = vmatpush2.msra.mxu0 0.0
    %434 = vmatprep.subr.mxu0 0.0
    %435 = vmatpush2.msra.mxu0 0.0
    %436 = vmatprep.subr.mxu0 0.0
    %437 = vmatpush2.msra.mxu0 0.0
    %438 = vmatprep.subr.mxu0 0.0
    %439 = vmatpush2.msra.mxu0 0.0
    %440 = vmatprep.subr.mxu0 0.0
    %441 = vmatpush2.msra.mxu0 0.0
    %442 = vmatprep.subr.mxu0 0.0
    %443 = vmatpush2.msra.mxu0 0.0
    %444 = vmatprep.subr.mxu0 0.0
    %445 = vmatpush2.msra.mxu0 0.0
    %446 = vmatprep.subr.mxu0 0.0
    %447 = vmatpush2.msra.mxu0 0.0
    %448 = vmatprep.subr.mxu0 0.0
    %449 = vmatpush2.msra.mxu0 0.0
    %450 = vmatprep.subr.mxu0 0.0
    %451 = vmatpush2.msra.mxu0 0.0
    %452 = vmatprep.subr.mxu0 0.0
    %453 = vmatpush2.msra.mxu0 0.0
    %454 = vmatprep.subr.mxu0 0.0
    %455 = vmatpush2.msra.mxu0 0.0
    %456 = vmatprep.subr.mxu0 0.0
    %457 = vmatpush2.msra.mxu0 0.0
    %458 = vmatprep.subr.mxu0 0.0
    %459 = vmatpush2.msra.mxu0 0.0
    %460 = vmatprep.subr.mxu0 0.0
    %461 = vmatpush2.msra.mxu0 0.0
    %462 = vmatprep.mubr.f32.mxu0 0.0
    %463 = vmatmul.mubr.f32.gmra.mxu0 %v396
    %v464 = vpop.f32.mrf.mxu0
    %v465 = vadd.f32 %v226, %v464
    %v466 = vpop.f32.mrf.mxu0
    %467 = vdwg.mxu0
    %v468 = vtanh.pop %v465
    %v469 = vsel %vm50, %v388, 0
    %471 = vmatprep.subr.mxu0 0.0
    %472 = vmatpush1.msra.mxu0 0.0
    %473 = vmatprep.subr.mxu0 0.0
    %474 = vmatpush1.msra.mxu0 0.0
    %475 = vmatprep.subr.mxu0 0.0
    %476 = vmatpush1.msra.mxu0 0.0
    %477 = vmatprep.subr.mxu0 0.0
    %478 = vmatpush1.msra.mxu0 0.0
    %479 = vmatprep.subr.mxu0 0.0
    %480 = vmatpush1.msra.mxu0 0.0
    %481 = vmatprep.subr.mxu0 0.0
    %482 = vmatpush1.msra.mxu0 0.0
    %483 = vmatprep.subr.mxu0 0.0
    %484 = vmatpush1.msra.mxu0 0.0
    %485 = vmatprep.subr.mxu0 0.0
    %486 = vmatpush1.msra.mxu0 0.0
    %487 = vmatprep.subr.mxu0 0.0
    %488 = vmatpush1.msra.mxu0 0.0
    %489 = vmatprep.subr.mxu0 0.0
    %490 = vmatpush1.msra.mxu0 0.0
    %491 = vmatprep.subr.mxu0 0.0
    %492 = vmatpush1.msra.mxu0 0.0
    %493 = vmatprep.subr.mxu0 0.0
    %494 = vmatpush1.msra.mxu0 0.0
    %495 = vmatprep.subr.mxu0 0.0
    %496 = vmatpush1.msra.mxu0 %v128
    %497 = vmatprep.subr.mxu0 0.0
    %498 = vmatpush1.msra.mxu0 %v127
    %499 = vmatprep.subr.mxu0 0.0
    %500 = vmatpush1.msra.mxu0 %v126
    %501 = vmatprep.subr.mxu0 0.0
    %502 = vmatpush1.msra.mxu0 %v125
    %503 = vmatprep.subr.mxu0 0.0
    %504 = vmatpush2.msra.mxu0 0.0
    %505 = vmatprep.subr.mxu0 0.0
    %506 = vmatpush2.msra.mxu0 0.0
    %507 = vmatprep.subr.mxu0 0.0
    %508 = vmatpush2.msra.mxu0 0.0
    %509 = vmatprep.subr.mxu0 0.0
    %510 = vmatpush2.msra.mxu0 0.0
    %511 = vmatprep.subr.mxu0 0.0
    %512 = vmatpush2.msra.mxu0 0.0
    %513 = vmatprep.subr.mxu0 0.0
    %514 = vmatpush2.msra.mxu0 0.0
    %515 = vmatprep.subr.mxu0 0.0
    %516 = vmatpush2.msra.mxu0 0.0
    %517 = vmatprep.subr.mxu0 0.0
    %518 = vmatpush2.msra.mxu0 0.0
    %519 = vmatprep.subr.mxu0 0.0
    %520 = vmatpush2.msra.mxu0 0.0
    %521 = vmatprep.subr.mxu0 0.0
    %522 = vmatpush2.msra.mxu0 0.0
    %523 = vmatprep.subr.mxu0 0.0
    %524 = vmatpush2.msra.mxu0 0.0
    %525 = vmatprep.subr.mxu0 0.0
    %526 = vmatpush2.msra.mxu0 0.0
    %527 = vmatprep.subr.mxu0 0.0
    %528 = vmatpush2.msra.mxu0 0.0
    %529 = vmatprep.subr.mxu0 0.0
    %530 = vmatpush2.msra.mxu0 0.0
    %531 = vmatprep.subr.mxu0 0.0
    %532 = vmatpush2.msra.mxu0 0.0
    %533 = vmatprep.subr.mxu0 0.0
    %534 = vmatpush2.msra.mxu0 0.0
    %535 = vmatprep.mubr.f32.mxu0 0.0
    %536 = vmatmul.mubr.f32.gmra.mxu0 %v469
    %v537 = vpop.f32.mrf.mxu0
    %v538 = vadd.f32 0.0, %v537
    %v539 = vpop.f32.mrf.mxu0
    %540 = vdwg.mxu0
    %542 = vrot.lane.b32.xlu0 %v538, 64
    %v543 = vpop.permute.xlu0 %542
    %v545 = vadd.f32 %v121, %v543
    %546 = vrot.lane.b32.xlu0 %v208, 64
    %v547 = vpop.permute.xlu0 %546
    %v549 = vadd.f32 %v545, %v547
    %v550 = vtanh.pop %v549
    %552 = vrot.lane.b32.xlu0 %v550, 64
    %v553 = vpop.permute.xlu0 %552
    %556 = vrot.lane.b32.xlu0 %v468, 32
    %v557 = vpop.permute.xlu0 %556
    %v559 = vsel %vm50, %v553, %v557
    %v561 = vsel %vm228, %v559, 0
    %563 = vmatprep.subr.mxu0 0.0
    %564 = vmatpush1.msra.mxu0 0.0
    %565 = vmatprep.subr.mxu0 0.0
    %566 = vmatpush1.msra.mxu0 0.0
    %567 = vmatprep.subr.mxu0 0.0
    %568 = vmatpush1.msra.mxu0 0.0
    %569 = vmatprep.subr.mxu0 0.0
    %570 = vmatpush1.msra.mxu0 0.0
    %571 = vmatprep.subr.mxu0 0.0
    %572 = vmatpush1.msra.mxu0 0.0
    %573 = vmatprep.subr.mxu0 0.0
    %574 = vmatpush1.msra.mxu0 0.0
    %575 = vmatprep.subr.mxu0 0.0
    %576 = vmatpush1.msra.mxu0 0.0
    %577 = vmatprep.subr.mxu0 0.0
    %578 = vmatpush1.msra.mxu0 0.0
    %579 = vmatprep.subr.mxu0 0.0
    %580 = vmatpush1.msra.mxu0 %v220
    %581 = vmatprep.subr.mxu0 0.0
    %582 = vmatpush1.msra.mxu0 %v219
    %583 = vmatprep.subr.mxu0 0.0
    %584 = vmatpush1.msra.mxu0 %v218
    %585 = vmatprep.subr.mxu0 0.0
    %586 = vmatpush1.msra.mxu0 %v217
    %587 = vmatprep.subr.mxu0 0.0
    %588 = vmatpush1.msra.mxu0 %v216
    %589 = vmatprep.subr.mxu0 0.0
    %590 = vmatpush1.msra.mxu0 %v215
    %591 = vmatprep.subr.mxu0 0.0
    %592 = vmatpush1.msra.mxu0 %v214
    %593 = vmatprep.subr.mxu0 0.0
    %594 = vmatpush1.msra.mxu0 %v213
    %595 = vmatprep.subr.mxu0 0.0
    %596 = vmatpush2.msra.mxu0 0.0
    %597 = vmatprep.subr.mxu0 0.0
    %598 = vmatpush2.msra.mxu0 0.0
    %599 = vmatprep.subr.mxu0 0.0
    %600 = vmatpush2.msra.mxu0 0.0
    %601 = vmatprep.subr.mxu0 0.0
    %602 = vmatpush2.msra.mxu0 0.0
    %603 = vmatprep.subr.mxu0 0.0
    %604 = vmatpush2.msra.mxu0 0.0
    %605 = vmatprep.subr.mxu0 0.0
    %606 = vmatpush2.msra.mxu0 0.0
    %607 = vmatprep.subr.mxu0 0.0
    %608 = vmatpush2.msra.mxu0 0.0
    %609 = vmatprep.subr.mxu0 0.0
    %610 = vmatpush2.msra.mxu0 0.0
    %611 = vmatprep.subr.mxu0 0.0
    %612 = vmatpush2.msra.mxu0 0.0
    %613 = vmatprep.subr.mxu0 0.0
    %614 = vmatpush2.msra.mxu0 0.0
    %615 = vmatprep.subr.mxu0 0.0
    %616 = vmatpush2.msra.mxu0 0.0
    %617 = vmatprep.subr.mxu0 0.0
    %618 = vmatpush2.msra.mxu0 0.0
    %619 = vmatprep.subr.mxu0 0.0
    %620 = vmatpush2.msra.mxu0 0.0
    %621 = vmatprep.subr.mxu0 0.0
    %622 = vmatpush2.msra.mxu0 0.0
    %623 = vmatprep.subr.mxu0 0.0
    %624 = vmatpush2.msra.mxu0 0.0
    %625 = vmatprep.subr.mxu0 0.0
    %626 = vmatpush2.msra.mxu0 0.0
    %627 = vmatprep.mubr.f32.mxu0 0.0
    %628 = vmatmul.mubr.f32.gmra.mxu0 %v561
    %v629 = vpop.f32.mrf.mxu0
    %v630 = vadd.f32 %v226, %v629
    %v631 = vpop.f32.mrf.mxu0
    %632 = vdwg.mxu0
    %v633 = vtanh.pop %v630
    %v634 = vsel %vm50, %v553, 0
    %636 = vmatprep.subr.mxu0 0.0
    %637 = vmatpush1.msra.mxu0 0.0
    %638 = vmatprep.subr.mxu0 0.0
    %639 = vmatpush1.msra.mxu0 0.0
    %640 = vmatprep.subr.mxu0 0.0
    %641 = vmatpush1.msra.mxu0 0.0
    %642 = vmatprep.subr.mxu0 0.0
    %643 = vmatpush1.msra.mxu0 0.0
    %644 = vmatprep.subr.mxu0 0.0
    %645 = vmatpush1.msra.mxu0 0.0
    %646 = vmatprep.subr.mxu0 0.0
    %647 = vmatpush1.msra.mxu0 0.0
    %648 = vmatprep.subr.mxu0 0.0
    %649 = vmatpush1.msra.mxu0 0.0
    %650 = vmatprep.subr.mxu0 0.0
    %651 = vmatpush1.msra.mxu0 0.0
    %652 = vmatprep.subr.mxu0 0.0
    %653 = vmatpush1.msra.mxu0 0.0
    %654 = vmatprep.subr.mxu0 0.0
    %655 = vmatpush1.msra.mxu0 0.0
    %656 = vmatprep.subr.mxu0 0.0
    %657 = vmatpush1.msra.mxu0 0.0
    %658 = vmatprep.subr.mxu0 0.0
    %659 = vmatpush1.msra.mxu0 0.0
    %660 = vmatprep.subr.mxu0 0.0
    %661 = vmatpush1.msra.mxu0 %v128
    %662 = vmatprep.subr.mxu0 0.0
    %663 = vmatpush1.msra.mxu0 %v127
    %664 = vmatprep.subr.mxu0 0.0
    %665 = vmatpush1.msra.mxu0 %v126
    %666 = vmatprep.subr.mxu0 0.0
    %667 = vmatpush1.msra.mxu0 %v125
    %668 = vmatprep.subr.mxu0 0.0
    %669 = vmatpush2.msra.mxu0 0.0
    %670 = vmatprep.subr.mxu0 0.0
    %671 = vmatpush2.msra.mxu0 0.0
    %672 = vmatprep.subr.mxu0 0.0
    %673 = vmatpush2.msra.mxu0 0.0
    %674 = vmatprep.subr.mxu0 0.0
    %675 = vmatpush2.msra.mxu0 0.0
    %676 = vmatprep.subr.mxu0 0.0
    %677 = vmatpush2.msra.mxu0 0.0
    %678 = vmatprep.subr.mxu0 0.0
    %679 = vmatpush2.msra.mxu0 0.0
    %680 = vmatprep.subr.mxu0 0.0
    %681 = vmatpush2.msra.mxu0 0.0
    %682 = vmatprep.subr.mxu0 0.0
    %683 = vmatpush2.msra.mxu0 0.0
    %684 = vmatprep.subr.mxu0 0.0
    %685 = vmatpush2.msra.mxu0 0.0
    %686 = vmatprep.subr.mxu0 0.0
    %687 = vmatpush2.msra.mxu0 0.0
    %688 = vmatprep.subr.mxu0 0.0
    %689 = vmatpush2.msra.mxu0 0.0
    %690 = vmatprep.subr.mxu0 0.0
    %691 = vmatpush2.msra.mxu0 0.0
    %692 = vmatprep.subr.mxu0 0.0
    %693 = vmatpush2.msra.mxu0 0.0
    %694 = vmatprep.subr.mxu0 0.0
    %695 = vmatpush2.msra.mxu0 0.0
    %696 = vmatprep.subr.mxu0 0.0
    %697 = vmatpush2.msra.mxu0 0.0
    %698 = vmatprep.subr.mxu0 0.0
    %699 = vmatpush2.msra.mxu0 0.0
    %700 = vmatprep.mubr.f32.mxu0 0.0
    %701 = vmatmul.mubr.f32.gmra.mxu0 %v634
    %v702 = vpop.f32.mrf.mxu0
    %v703 = vadd.f32 0.0, %v702
    %v704 = vpop.f32.mrf.mxu0
    %705 = vdwg.mxu0
    %707 = vrot.lane.b32.xlu0 %v703, 96
    %v708 = vpop.permute.xlu0 %707
    %v710 = vadd.f32 %v121, %v708
    %711 = vrot.lane.b32.xlu0 %v208, 96
    %v712 = vpop.permute.xlu0 %711
    %v714 = vadd.f32 %v710, %v712
    %v715 = vtanh.pop %v714
    %717 = vrot.lane.b32.xlu0 %v715, 32
    %v718 = vpop.permute.xlu0 %717
    %721 = vrot.lane.b32.xlu0 %v633, 32
    %v722 = vpop.permute.xlu0 %721
    %v724 = vsel %vm50, %v718, %v722
    %v726 = vsel %vm228, %v724, 0
    %728 = vmatprep.subr.mxu0 0.0
    %729 = vmatpush1.msra.mxu0 0.0
    %730 = vmatprep.subr.mxu0 0.0
    %731 = vmatpush1.msra.mxu0 0.0
    %732 = vmatprep.subr.mxu0 0.0
    %733 = vmatpush1.msra.mxu0 0.0
    %734 = vmatprep.subr.mxu0 0.0
    %735 = vmatpush1.msra.mxu0 0.0
    %736 = vmatprep.subr.mxu0 0.0
    %737 = vmatpush1.msra.mxu0 0.0
    %738 = vmatprep.subr.mxu0 0.0
    %739 = vmatpush1.msra.mxu0 0.0
    %740 = vmatprep.subr.mxu0 0.0
    %741 = vmatpush1.msra.mxu0 0.0
    %742 = vmatprep.subr.mxu0 0.0
    %743 = vmatpush1.msra.mxu0 0.0
    %744 = vmatprep.subr.mxu0 0.0
    %745 = vmatpush1.msra.mxu0 %v220
    %746 = vmatprep.subr.mxu0 0.0
    %747 = vmatpush1.msra.mxu0 %v219
    %748 = vmatprep.subr.mxu0 0.0
    %749 = vmatpush1.msra.mxu0 %v218
    %750 = vmatprep.subr.mxu0 0.0
    %751 = vmatpush1.msra.mxu0 %v217
    %752 = vmatprep.subr.mxu0 0.0
    %753 = vmatpush1.msra.mxu0 %v216
    %754 = vmatprep.subr.mxu0 0.0
    %755 = vmatpush1.msra.mxu0 %v215
    %756 = vmatprep.subr.mxu0 0.0
    %757 = vmatpush1.msra.mxu0 %v214
    %758 = vmatprep.subr.mxu0 0.0
    %759 = vmatpush1.msra.mxu0 %v213
    %760 = vmatprep.subr.mxu0 0.0
    %761 = vmatpush2.msra.mxu0 0.0
    %762 = vmatprep.subr.mxu0 0.0
    %763 = vmatpush2.msra.mxu0 0.0
    %764 = vmatprep.subr.mxu0 0.0
    %765 = vmatpush2.msra.mxu0 0.0
    %766 = vmatprep.subr.mxu0 0.0
    %767 = vmatpush2.msra.mxu0 0.0
    %768 = vmatprep.subr.mxu0 0.0
    %769 = vmatpush2.msra.mxu0 0.0
    %770 = vmatprep.subr.mxu0 0.0
    %771 = vmatpush2.msra.mxu0 0.0
    %772 = vmatprep.subr.mxu0 0.0
    %773 = vmatpush2.msra.mxu0 0.0
    %774 = vmatprep.subr.mxu0 0.0
    %775 = vmatpush2.msra.mxu0 0.0
    %776 = vmatprep.subr.mxu0 0.0
    %777 = vmatpush2.msra.mxu0 0.0
    %778 = vmatprep.subr.mxu0 0.0
    %779 = vmatpush2.msra.mxu0 0.0
    %780 = vmatprep.subr.mxu0 0.0
    %781 = vmatpush2.msra.mxu0 0.0
    %782 = vmatprep.subr.mxu0 0.0
    %783 = vmatpush2.msra.mxu0 0.0
    %784 = vmatprep.subr.mxu0 0.0
    %785 = vmatpush2.msra.mxu0 0.0
    %786 = vmatprep.subr.mxu0 0.0
    %787 = vmatpush2.msra.mxu0 0.0
    %788 = vmatprep.subr.mxu0 0.0
    %789 = vmatpush2.msra.mxu0 0.0
    %790 = vmatprep.subr.mxu0 0.0
    %791 = vmatpush2.msra.mxu0 0.0
    %792 = vmatprep.mubr.f32.mxu0 0.0
    %793 = vmatmul.mubr.f32.gmra.mxu0 %v726
    %v794 = vpop.f32.mrf.mxu0
    %v795 = vadd.f32 %v226, %v794
    %v796 = vpop.f32.mrf.mxu0
    %797 = vdwg.mxu0
    %v798 = vtanh.pop %v795
    %v799 = vsel %vm50, %v718, 0
    %801 = vmatprep.subr.mxu0 0.0
    %802 = vmatpush1.msra.mxu0 0.0
    %803 = vmatprep.subr.mxu0 0.0
    %804 = vmatpush1.msra.mxu0 0.0
    %805 = vmatprep.subr.mxu0 0.0
    %806 = vmatpush1.msra.mxu0 0.0
    %807 = vmatprep.subr.mxu0 0.0
    %808 = vmatpush1.msra.mxu0 0.0
    %809 = vmatprep.subr.mxu0 0.0
    %810 = vmatpush1.msra.mxu0 0.0
    %811 = vmatprep.subr.mxu0 0.0
    %812 = vmatpush1.msra.mxu0 0.0
    %813 = vmatprep.subr.mxu0 0.0
    %814 = vmatpush1.msra.mxu0 0.0
    %815 = vmatprep.subr.mxu0 0.0
    %816 = vmatpush1.msra.mxu0 0.0
    %817 = vmatprep.subr.mxu0 0.0
    %818 = vmatpush1.msra.mxu0 0.0
    %819 = vmatprep.subr.mxu0 0.0
    %820 = vmatpush1.msra.mxu0 0.0
    %821 = vmatprep.subr.mxu0 0.0
    %822 = vmatpush1.msra.mxu0 0.0
    %823 = vmatprep.subr.mxu0 0.0
    %824 = vmatpush1.msra.mxu0 0.0
    %825 = vmatprep.subr.mxu0 0.0
    %826 = vmatpush1.msra.mxu0 %v128
    %827 = vmatprep.subr.mxu0 0.0
    %828 = vmatpush1.msra.mxu0 %v127
    %829 = vmatprep.subr.mxu0 0.0
    %830 = vmatpush1.msra.mxu0 %v126
    %831 = vmatprep.subr.mxu0 0.0
    %832 = vmatpush1.msra.mxu0 %v125
    %833 = vmatprep.subr.mxu0 0.0
    %834 = vmatpush2.msra.mxu0 0.0
    %835 = vmatprep.subr.mxu0 0.0
    %836 = vmatpush2.msra.mxu0 0.0
    %837 = vmatprep.subr.mxu0 0.0
    %838 = vmatpush2.msra.mxu0 0.0
    %839 = vmatprep.subr.mxu0 0.0
    %840 = vmatpush2.msra.mxu0 0.0
    %841 = vmatprep.subr.mxu0 0.0
    %842 = vmatpush2.msra.mxu0 0.0
    %843 = vmatprep.subr.mxu0 0.0
    %844 = vmatpush2.msra.mxu0 0.0
    %845 = vmatprep.subr.mxu0 0.0
    %846 = vmatpush2.msra.mxu0 0.0
    %847 = vmatprep.subr.mxu0 0.0
    %848 = vmatpush2.msra.mxu0 0.0
    %849 = vmatprep.subr.mxu0 0.0
    %850 = vmatpush2.msra.mxu0 0.0
    %851 = vmatprep.subr.mxu0 0.0
    %852 = vmatpush2.msra.mxu0 0.0
    %853 = vmatprep.subr.mxu0 0.0
    %854 = vmatpush2.msra.mxu0 0.0
    %855 = vmatprep.subr.mxu0 0.0
    %856 = vmatpush2.msra.mxu0 0.0
    %857 = vmatprep.subr.mxu0 0.0
    %858 = vmatpush2.msra.mxu0 0.0
    %859 = vmatprep.subr.mxu0 0.0
    %860 = vmatpush2.msra.mxu0 0.0
    %861 = vmatprep.subr.mxu0 0.0
    %862 = vmatpush2.msra.mxu0 0.0
    %863 = vmatprep.subr.mxu0 0.0
    %864 = vmatpush2.msra.mxu0 0.0
    %865 = vmatprep.mubr.f32.mxu0 0.0
    %866 = vmatmul.mubr.f32.gmra.mxu0 %v799
    %v867 = vpop.f32.mrf.mxu0
    %v868 = vadd.f32 0.0, %v867
    %v869 = vpop.f32.mrf.mxu0
    %870 = vdwg.mxu0
    %v871 = vadd.f32 %v123, %v868
    %v872 = vadd.f32 %v871, %v208
    %v873 = vtanh.pop %v872
    %875 = vrot.lane.b32.xlu0 %v798, 32
    %v876 = vpop.permute.xlu0 %875
    %v878 = vsel %vm50, %v873, %v876
    %v880 = vsel %vm228, %v878, 0
    %882 = vmatprep.subr.mxu0 0.0
    %883 = vmatpush1.msra.mxu0 0.0
    %884 = vmatprep.subr.mxu0 0.0
    %885 = vmatpush1.msra.mxu0 0.0
    %886 = vmatprep.subr.mxu0 0.0
    %887 = vmatpush1.msra.mxu0 0.0
    %888 = vmatprep.subr.mxu0 0.0
    %889 = vmatpush1.msra.mxu0 0.0
    %890 = vmatprep.subr.mxu0 0.0
    %891 = vmatpush1.msra.mxu0 0.0
    %892 = vmatprep.subr.mxu0 0.0
    %893 = vmatpush1.msra.mxu0 0.0
    %894 = vmatprep.subr.mxu0 0.0
    %895 = vmatpush1.msra.mxu0 0.0
    %896 = vmatprep.subr.mxu0 0.0
    %897 = vmatpush1.msra.mxu0 0.0
    %898 = vmatprep.subr.mxu0 0.0
    %899 = vmatpush1.msra.mxu0 %v220
    %900 = vmatprep.subr.mxu0 0.0
    %901 = vmatpush1.msra.mxu0 %v219
    %902 = vmatprep.subr.mxu0 0.0
    %903 = vmatpush1.msra.mxu0 %v218
    %904 = vmatprep.subr.mxu0 0.0
    %905 = vmatpush1.msra.mxu0 %v217
    %906 = vmatprep.subr.mxu0 0.0
    %907 = vmatpush1.msra.mxu0 %v216
    %908 = vmatprep.subr.mxu0 0.0
    %909 = vmatpush1.msra.mxu0 %v215
    %910 = vmatprep.subr.mxu0 0.0
    %911 = vmatpush1.msra.mxu0 %v214
    %912 = vmatprep.subr.mxu0 0.0
    %913 = vmatpush1.msra.mxu0 %v213
    %914 = vmatprep.subr.mxu0 0.0
    %915 = vmatpush2.msra.mxu0 0.0
    %916 = vmatprep.subr.mxu0 0.0
    %917 = vmatpush2.msra.mxu0 0.0
    %918 = vmatprep.subr.mxu0 0.0
    %919 = vmatpush2.msra.mxu0 0.0
    %920 = vmatprep.subr.mxu0 0.0
    %921 = vmatpush2.msra.mxu0 0.0
    %922 = vmatprep.subr.mxu0 0.0
    %923 = vmatpush2.msra.mxu0 0.0
    %924 = vmatprep.subr.mxu0 0.0
    %925 = vmatpush2.msra.mxu0 0.0
    %926 = vmatprep.subr.mxu0 0.0
    %927 = vmatpush2.msra.mxu0 0.0
    %928 = vmatprep.subr.mxu0 0.0
    %929 = vmatpush2.msra.mxu0 0.0
    %930 = vmatprep.subr.mxu0 0.0
    %931 = vmatpush2.msra.mxu0 0.0
    %932 = vmatprep.subr.mxu0 0.0
    %933 = vmatpush2.msra.mxu0 0.0
    %934 = vmatprep.subr.mxu0 0.0
    %935 = vmatpush2.msra.mxu0 0.0
    %936 = vmatprep.subr.mxu0 0.0
    %937 = vmatpush2.msra.mxu0 0.0
    %938 = vmatprep.subr.mxu0 0.0
    %939 = vmatpush2.msra.mxu0 0.0
    %940 = vmatprep.subr.mxu0 0.0
    %941 = vmatpush2.msra.mxu0 0.0
    %942 = vmatprep.subr.mxu0 0.0
    %943 = vmatpush2.msra.mxu0 0.0
    %944 = vmatprep.subr.mxu0 0.0
    %945 = vmatpush2.msra.mxu0 0.0
    %946 = vmatprep.mubr.f32.mxu0 0.0
    %947 = vmatmul.mubr.f32.gmra.mxu0 %v880
    %v948 = vpop.f32.mrf.mxu0
    %v949 = vadd.f32 %v226, %v948
    %v950 = vpop.f32.mrf.mxu0
    %951 = vdwg.mxu0
    %v952 = vtanh.pop %v949
    %v954 = vsel %vm50, %v873, 0
    %956 = vmatprep.subr.mxu0 0.0
    %957 = vmatpush1.msra.mxu0 0.0
    %958 = vmatprep.subr.mxu0 0.0
    %959 = vmatpush1.msra.mxu0 0.0
    %960 = vmatprep.subr.mxu0 0.0
    %961 = vmatpush1.msra.mxu0 0.0
    %962 = vmatprep.subr.mxu0 0.0
    %963 = vmatpush1.msra.mxu0 0.0
    %964 = vmatprep.subr.mxu0 0.0
    %965 = vmatpush1.msra.mxu0 0.0
    %966 = vmatprep.subr.mxu0 0.0
    %967 = vmatpush1.msra.mxu0 0.0
    %968 = vmatprep.subr.mxu0 0.0
    %969 = vmatpush1.msra.mxu0 0.0
    %970 = vmatprep.subr.mxu0 0.0
    %971 = vmatpush1.msra.mxu0 0.0
    %972 = vmatprep.subr.mxu0 0.0
    %973 = vmatpush1.msra.mxu0 0.0
    %974 = vmatprep.subr.mxu0 0.0
    %975 = vmatpush1.msra.mxu0 0.0
    %976 = vmatprep.subr.mxu0 0.0
    %977 = vmatpush1.msra.mxu0 0.0
    %978 = vmatprep.subr.mxu0 0.0
    %979 = vmatpush1.msra.mxu0 0.0
    %980 = vmatprep.subr.mxu0 0.0
    %981 = vmatpush1.msra.mxu0 %v128
    %982 = vmatprep.subr.mxu0 0.0
    %983 = vmatpush1.msra.mxu0 %v127
    %984 = vmatprep.subr.mxu0 0.0
    %985 = vmatpush1.msra.mxu0 %v126
    %986 = vmatprep.subr.mxu0 0.0
    %987 = vmatpush1.msra.mxu0 %v125
    %988 = vmatprep.subr.mxu0 0.0
    %989 = vmatpush2.msra.mxu0 0.0
    %990 = vmatprep.subr.mxu0 0.0
    %991 = vmatpush2.msra.mxu0 0.0
    %992 = vmatprep.subr.mxu0 0.0
    %993 = vmatpush2.msra.mxu0 0.0
    %994 = vmatprep.subr.mxu0 0.0
    %995 = vmatpush2.msra.mxu0 0.0
    %996 = vmatprep.subr.mxu0 0.0
    %997 = vmatpush2.msra.mxu0 0.0
    %998 = vmatprep.subr.mxu0 0.0
    %999 = vmatpush2.msra.mxu0 0.0
    %1000 = vmatprep.subr.mxu0 0.0
    %1001 = vmatpush2.msra.mxu0 0.0
    %1002 = vmatprep.subr.mxu0 0.0
    %1003 = vmatpush2.msra.mxu0 0.0
    %1004 = vmatprep.subr.mxu0 0.0
    %1005 = vmatpush2.msra.mxu0 0.0
    %1006 = vmatprep.subr.mxu0 0.0
    %1007 = vmatpush2.msra.mxu0 0.0
    %1008 = vmatprep.subr.mxu0 0.0
    %1009 = vmatpush2.msra.mxu0 0.0
    %1010 = vmatprep.subr.mxu0 0.0
    %1011 = vmatpush2.msra.mxu0 0.0
    %1012 = vmatprep.subr.mxu0 0.0
    %1013 = vmatpush2.msra.mxu0 0.0
    %1014 = vmatprep.subr.mxu0 0.0
    %1015 = vmatpush2.msra.mxu0 0.0
    %1016 = vmatprep.subr.mxu0 0.0
    %1017 = vmatpush2.msra.mxu0 0.0
    %1018 = vmatprep.subr.mxu0 0.0
    %1019 = vmatpush2.msra.mxu0 0.0
    %1020 = vmatprep.mubr.f32.mxu0 0.0
    %1021 = vmatmul.mubr.f32.gmra.mxu0 %v954
    %v1022 = vpop.f32.mrf.mxu0
    %v1023 = vadd.f32 0.0, %v1022
    %v1024 = vpop.f32.mrf.mxu0
    %1025 = vdwg.mxu0
    %1027 = vrot.lane.b32.xlu0 %v1023, 32
    %v1028 = vpop.permute.xlu0 %1027
    %v1030 = vadd.f32 %v123, %v1028
    %v1031 = vadd.f32 %v1030, %v382
    %v1032 = vtanh.pop %v1031
    %1034 = vrot.lane.b32.xlu0 %v1032, 96
    %v1035 = vpop.permute.xlu0 %1034
    %1038 = vrot.lane.b32.xlu0 %v952, 32
    %v1039 = vpop.permute.xlu0 %1038
    %v1041 = vsel %vm50, %v1035, %v1039
    %v1043 = vsel %vm228, %v1041, 0
    %1045 = vmatprep.subr.mxu0 0.0
    %1046 = vmatpush1.msra.mxu0 0.0
    %1047 = vmatprep.subr.mxu0 0.0
    %1048 = vmatpush1.msra.mxu0 0.0
    %1049 = vmatprep.subr.mxu0 0.0
    %1050 = vmatpush1.msra.mxu0 0.0
    %1051 = vmatprep.subr.mxu0 0.0
    %1052 = vmatpush1.msra.mxu0 0.0
    %1053 = vmatprep.subr.mxu0 0.0
    %1054 = vmatpush1.msra.mxu0 0.0
    %1055 = vmatprep.subr.mxu0 0.0
    %1056 = vmatpush1.msra.mxu0 0.0
    %1057 = vmatprep.subr.mxu0 0.0
    %1058 = vmatpush1.msra.mxu0 0.0
    %1059 = vmatprep.subr.mxu0 0.0
    %1060 = vmatpush1.msra.mxu0 0.0
    %1061 = vmatprep.subr.mxu0 0.0
    %1062 = vmatpush1.msra.mxu0 %v220
    %1063 = vmatprep.subr.mxu0 0.0
    %1064 = vmatpush1.msra.mxu0 %v219
    %1065 = vmatprep.subr.mxu0 0.0
    %1066 = vmatpush1.msra.mxu0 %v218
    %1067 = vmatprep.subr.mxu0 0.0
    %1068 = vmatpush1.msra.mxu0 %v217
    %1069 = vmatprep.subr.mxu0 0.0
    %1070 = vmatpush1.msra.mxu0 %v216
    %1071 = vmatprep.subr.mxu0 0.0
    %1072 = vmatpush1.msra.mxu0 %v215
    %1073 = vmatprep.subr.mxu0 0.0
    %1074 = vmatpush1.msra.mxu0 %v214
    %1075 = vmatprep.subr.mxu0 0.0
    %1076 = vmatpush1.msra.mxu0 %v213
    %1077 = vmatprep.subr.mxu0 0.0
    %1078 = vmatpush2.msra.mxu0 0.0
    %1079 = vmatprep.subr.mxu0 0.0
    %1080 = vmatpush2.msra.mxu0 0.0
    %1081 = vmatprep.subr.mxu0 0.0
    %1082 = vmatpush2.msra.mxu0 0.0
    %1083 = vmatprep.subr.mxu0 0.0
    %1084 = vmatpush2.msra.mxu0 0.0
    %1085 = vmatprep.subr.mxu0 0.0
    %1086 = vmatpush2.msra.mxu0 0.0
    %1087 = vmatprep.subr.mxu0 0.0
    %1088 = vmatpush2.msra.mxu0 0.0
    %1089 = vmatprep.subr.mxu0 0.0
    %1090 = vmatpush2.msra.mxu0 0.0
    %1091 = vmatprep.subr.mxu0 0.0
    %1092 = vmatpush2.msra.mxu0 0.0
    %1093 = vmatprep.subr.mxu0 0.0
    %1094 = vmatpush2.msra.mxu0 0.0
    %1095 = vmatprep.subr.mxu0 0.0
    %1096 = vmatpush2.msra.mxu0 0.0
    %1097 = vmatprep.subr.mxu0 0.0
    %1098 = vmatpush2.msra.mxu0 0.0
    %1099 = vmatprep.subr.mxu0 0.0
    %1100 = vmatpush2.msra.mxu0 0.0
    %1101 = vmatprep.subr.mxu0 0.0
    %1102 = vmatpush2.msra.mxu0 0.0
    %1103 = vmatprep.subr.mxu0 0.0
    %1104 = vmatpush2.msra.mxu0 0.0
    %1105 = vmatprep.subr.mxu0 0.0
    %1106 = vmatpush2.msra.mxu0 0.0
    %1107 = vmatprep.subr.mxu0 0.0
    %1108 = vmatpush2.msra.mxu0 0.0
    %1109 = vmatprep.mubr.f32.mxu0 0.0
    %1110 = vmatmul.mubr.f32.gmra.mxu0 %v1043
    %v1111 = vpop.f32.mrf.mxu0
    %v1112 = vadd.f32 %v226, %v1111
    %v1113 = vpop.f32.mrf.mxu0
    %1114 = vdwg.mxu0
    %v1115 = vtanh.pop %v1112
    %v1116 = vsel %vm50, %v1035, 0
    %1118 = vmatprep.subr.mxu0 0.0
    %1119 = vmatpush1.msra.mxu0 0.0
    %1120 = vmatprep.subr.mxu0 0.0
    %1121 = vmatpush1.msra.mxu0 0.0
    %1122 = vmatprep.subr.mxu0 0.0
    %1123 = vmatpush1.msra.mxu0 0.0
    %1124 = vmatprep.subr.mxu0 0.0
    %1125 = vmatpush1.msra.mxu0 0.0
    %1126 = vmatprep.subr.mxu0 0.0
    %1127 = vmatpush1.msra.mxu0 0.0
    %1128 = vmatprep.subr.mxu0 0.0
    %1129 = vmatpush1.msra.mxu0 0.0
    %1130 = vmatprep.subr.mxu0 0.0
    %1131 = vmatpush1.msra.mxu0 0.0
    %1132 = vmatprep.subr.mxu0 0.0
    %1133 = vmatpush1.msra.mxu0 0.0
    %1134 = vmatprep.subr.mxu0 0.0
    %1135 = vmatpush1.msra.mxu0 0.0
    %1136 = vmatprep.subr.mxu0 0.0
    %1137 = vmatpush1.msra.mxu0 0.0
    %1138 = vmatprep.subr.mxu0 0.0
    %1139 = vmatpush1.msra.mxu0 0.0
    %1140 = vmatprep.subr.mxu0 0.0
    %1141 = vmatpush1.msra.mxu0 0.0
    %1142 = vmatprep.subr.mxu0 0.0
    %1143 = vmatpush1.msra.mxu0 %v128
    %1144 = vmatprep.subr.mxu0 0.0
    %1145 = vmatpush1.msra.mxu0 %v127
    %1146 = vmatprep.subr.mxu0 0.0
    %1147 = vmatpush1.msra.mxu0 %v126
    %1148 = vmatprep.subr.mxu0 0.0
    %1149 = vmatpush1.msra.mxu0 %v125
    %1150 = vmatprep.subr.mxu0 0.0
    %1151 = vmatpush2.msra.mxu0 0.0
    %1152 = vmatprep.subr.mxu0 0.0
    %1153 = vmatpush2.msra.mxu0 0.0
    %1154 = vmatprep.subr.mxu0 0.0
    %1155 = vmatpush2.msra.mxu0 0.0
    %1156 = vmatprep.subr.mxu0 0.0
    %1157 = vmatpush2.msra.mxu0 0.0
    %1158 = vmatprep.subr.mxu0 0.0
    %1159 = vmatpush2.msra.mxu0 0.0
    %1160 = vmatprep.subr.mxu0 0.0
    %1161 = vmatpush2.msra.mxu0 0.0
    %1162 = vmatprep.subr.mxu0 0.0
    %1163 = vmatpush2.msra.mxu0 0.0
    %1164 = vmatprep.subr.mxu0 0.0
    %1165 = vmatpush2.msra.mxu0 0.0
    %1166 = vmatprep.subr.mxu0 0.0
    %1167 = vmatpush2.msra.mxu0 0.0
    %1168 = vmatprep.subr.mxu0 0.0
    %1169 = vmatpush2.msra.mxu0 0.0
    %1170 = vmatprep.subr.mxu0 0.0
    %1171 = vmatpush2.msra.mxu0 0.0
    %1172 = vmatprep.subr.mxu0 0.0
    %1173 = vmatpush2.msra.mxu0 0.0
    %1174 = vmatprep.subr.mxu0 0.0
    %1175 = vmatpush2.msra.mxu0 0.0
    %1176 = vmatprep.subr.mxu0 0.0
    %1177 = vmatpush2.msra.mxu0 0.0
    %1178 = vmatprep.subr.mxu0 0.0
    %1179 = vmatpush2.msra.mxu0 0.0
    %1180 = vmatprep.subr.mxu0 0.0
    %1181 = vmatpush2.msra.mxu0 0.0
    %1182 = vmatprep.mubr.f32.mxu0 0.0
    %1183 = vmatmul.mubr.f32.gmra.mxu0 %v1116
    %v1184 = vpop.f32.mrf.mxu0
    %v1185 = vadd.f32 0.0, %v1184
    %v1186 = vpop.f32.mrf.mxu0
    %1187 = vdwg.mxu0
    %1189 = vrot.lane.b32.xlu0 %v1185, 64
    %v1190 = vpop.permute.xlu0 %1189
    %v1192 = vadd.f32 %v123, %v1190
    %v1193 = vadd.f32 %v1192, %v547
    %v1194 = vtanh.pop %v1193
    %1196 = vrot.lane.b32.xlu0 %v1194, 64
    %v1197 = vpop.permute.xlu0 %1196
    %1200 = vrot.lane.b32.xlu0 %v1115, 32
    %v1201 = vpop.permute.xlu0 %1200
    %v1203 = vsel %vm50, %v1197, %v1201
    %v1205 = vsel %vm228, %v1203, 0
    %1207 = vmatprep.subr.mxu0 0.0
    %1208 = vmatpush1.msra.mxu0 0.0
    %1209 = vmatprep.subr.mxu0 0.0
    %1210 = vmatpush1.msra.mxu0 0.0
    %1211 = vmatprep.subr.mxu0 0.0
    %1212 = vmatpush1.msra.mxu0 0.0
    %1213 = vmatprep.subr.mxu0 0.0
    %1214 = vmatpush1.msra.mxu0 0.0
    %1215 = vmatprep.subr.mxu0 0.0
    %1216 = vmatpush1.msra.mxu0 0.0
    %1217 = vmatprep.subr.mxu0 0.0
    %1218 = vmatpush1.msra.mxu0 0.0
    %1219 = vmatprep.subr.mxu0 0.0
    %1220 = vmatpush1.msra.mxu0 0.0
    %1221 = vmatprep.subr.mxu0 0.0
    %1222 = vmatpush1.msra.mxu0 0.0
    %1223 = vmatprep.subr.mxu0 0.0
    %1224 = vmatpush1.msra.mxu0 %v220
    %1225 = vmatprep.subr.mxu0 0.0
    %1226 = vmatpush1.msra.mxu0 %v219
    %1227 = vmatprep.subr.mxu0 0.0
    %1228 = vmatpush1.msra.mxu0 %v218
    %1229 = vmatprep.subr.mxu0 0.0
    %1230 = vmatpush1.msra.mxu0 %v217
    %1231 = vmatprep.subr.mxu0 0.0
    %1232 = vmatpush1.msra.mxu0 %v216
    %1233 = vmatprep.subr.mxu0 0.0
    %1234 = vmatpush1.msra.mxu0 %v215
    %1235 = vmatprep.subr.mxu0 0.0
    %1236 = vmatpush1.msra.mxu0 %v214
    %1237 = vmatprep.subr.mxu0 0.0
    %1238 = vmatpush1.msra.mxu0 %v213
    %1239 = vmatprep.subr.mxu0 0.0
    %1240 = vmatpush2.msra.mxu0 0.0
    %1241 = vmatprep.subr.mxu0 0.0
    %1242 = vmatpush2.msra.mxu0 0.0
    %1243 = vmatprep.subr.mxu0 0.0
    %1244 = vmatpush2.msra.mxu0 0.0
    %1245 = vmatprep.subr.mxu0 0.0
    %1246 = vmatpush2.msra.mxu0 0.0
    %1247 = vmatprep.subr.mxu0 0.0
    %1248 = vmatpush2.msra.mxu0 0.0
    %1249 = vmatprep.subr.mxu0 0.0
    %1250 = vmatpush2.msra.mxu0 0.0
    %1251 = vmatprep.subr.mxu0 0.0
    %1252 = vmatpush2.msra.mxu0 0.0
    %1253 = vmatprep.subr.mxu0 0.0
    %1254 = vmatpush2.msra.mxu0 0.0
    %1255 = vmatprep.subr.mxu0 0.0
    %1256 = vmatpush2.msra.mxu0 0.0
    %1257 = vmatprep.subr.mxu0 0.0
    %1258 = vmatpush2.msra.mxu0 0.0
    %1259 = vmatprep.subr.mxu0 0.0
    %1260 = vmatpush2.msra.mxu0 0.0
    %1261 = vmatprep.subr.mxu0 0.0
    %1262 = vmatpush2.msra.mxu0 0.0
    %1263 = vmatprep.subr.mxu0 0.0
    %1264 = vmatpush2.msra.mxu0 0.0
    %1265 = vmatprep.subr.mxu0 0.0
    %1266 = vmatpush2.msra.mxu0 0.0
    %1267 = vmatprep.subr.mxu0 0.0
    %1268 = vmatpush2.msra.mxu0 0.0
    %1269 = vmatprep.subr.mxu0 0.0
    %1270 = vmatpush2.msra.mxu0 0.0
    %1271 = vmatprep.mubr.f32.mxu0 0.0
    %1272 = vmatmul.mubr.f32.gmra.mxu0 %v1205
    %v1273 = vpop.f32.mrf.mxu0
    %v1274 = vadd.f32 %v226, %v1273
    %v1275 = vpop.f32.mrf.mxu0
    %1276 = vdwg.mxu0
    %v1277 = vtanh.pop %v1274
    %v1278 = vsel %vm50, %v1197, 0
    %1280 = vmatprep.subr.mxu0 0.0
    %1281 = vmatpush1.msra.mxu0 0.0
    %1282 = vmatprep.subr.mxu0 0.0
    %1283 = vmatpush1.msra.mxu0 0.0
    %1284 = vmatprep.subr.mxu0 0.0
    %1285 = vmatpush1.msra.mxu0 0.0
    %1286 = vmatprep.subr.mxu0 0.0
    %1287 = vmatpush1.msra.mxu0 0.0
    %1288 = vmatprep.subr.mxu0 0.0
    %1289 = vmatpush1.msra.mxu0 0.0
    %1290 = vmatprep.subr.mxu0 0.0
    %1291 = vmatpush1.msra.mxu0 0.0
    %1292 = vmatprep.subr.mxu0 0.0
    %1293 = vmatpush1.msra.mxu0 0.0
    %1294 = vmatprep.subr.mxu0 0.0
    %1295 = vmatpush1.msra.mxu0 0.0
    %1296 = vmatprep.subr.mxu0 0.0
    %1297 = vmatpush1.msra.mxu0 0.0
    %1298 = vmatprep.subr.mxu0 0.0
    %1299 = vmatpush1.msra.mxu0 0.0
    %1300 = vmatprep.subr.mxu0 0.0
    %1301 = vmatpush1.msra.mxu0 0.0
    %1302 = vmatprep.subr.mxu0 0.0
    %1303 = vmatpush1.msra.mxu0 0.0
    %1304 = vmatprep.subr.mxu0 0.0
    %1305 = vmatpush1.msra.mxu0 %v128
    %1306 = vmatprep.subr.mxu0 0.0
    %1307 = vmatpush1.msra.mxu0 %v127
    %1308 = vmatprep.subr.mxu0 0.0
    %1309 = vmatpush1.msra.mxu0 %v126
    %1310 = vmatprep.subr.mxu0 0.0
    %1311 = vmatpush1.msra.mxu0 %v125
    %1312 = vmatprep.subr.mxu0 0.0
    %1313 = vmatpush2.msra.mxu0 0.0
    %1314 = vmatprep.subr.mxu0 0.0
    %1315 = vmatpush2.msra.mxu0 0.0
    %1316 = vmatprep.subr.mxu0 0.0
    %1317 = vmatpush2.msra.mxu0 0.0
    %1318 = vmatprep.subr.mxu0 0.0
    %1319 = vmatpush2.msra.mxu0 0.0
    %1320 = vmatprep.subr.mxu0 0.0
    %1321 = vmatpush2.msra.mxu0 0.0
    %1322 = vmatprep.subr.mxu0 0.0
    %1323 = vmatpush2.msra.mxu0 0.0
    %1324 = vmatprep.subr.mxu0 0.0
    %1325 = vmatpush2.msra.mxu0 0.0
    %1326 = vmatprep.subr.mxu0 0.0
    %1327 = vmatpush2.msra.mxu0 0.0
    %1328 = vmatprep.subr.mxu0 0.0
    %1329 = vmatpush2.msra.mxu0 0.0
    %1330 = vmatprep.subr.mxu0 0.0
    %1331 = vmatpush2.msra.mxu0 0.0
    %1332 = vmatprep.subr.mxu0 0.0
    %1333 = vmatpush2.msra.mxu0 0.0
    %1334 = vmatprep.subr.mxu0 0.0
    %1335 = vmatpush2.msra.mxu0 0.0
    %1336 = vmatprep.subr.mxu0 0.0
    %1337 = vmatpush2.msra.mxu0 0.0
    %1338 = vmatprep.subr.mxu0 0.0
    %1339 = vmatpush2.msra.mxu0 0.0
    %1340 = vmatprep.subr.mxu0 0.0
    %1341 = vmatpush2.msra.mxu0 0.0
    %1342 = vmatprep.subr.mxu0 0.0
    %1343 = vmatpush2.msra.mxu0 0.0
    %1344 = vmatprep.mubr.f32.mxu0 0.0
    %1345 = vmatmul.mubr.f32.gmra.mxu0 %v1278
    %v1346 = vpop.f32.mrf.mxu0
    %v1347 = vadd.f32 0.0, %v1346
    %v1348 = vpop.f32.mrf.mxu0
    %1349 = vdwg.mxu0
    %1351 = vrot.lane.b32.xlu0 %v1347, 96
    %v1352 = vpop.permute.xlu0 %1351
    %v1354 = vadd.f32 %v123, %v1352
    %v1355 = vadd.f32 %v1354, %v712
    %v1356 = vtanh.pop %v1355
    %1358 = vrot.lane.b32.xlu0 %v1356, 32
    %v1359 = vpop.permute.xlu0 %1358
    %1362 = vrot.lane.b32.xlu0 %v1277, 32
    %v1363 = vpop.permute.xlu0 %1362
    %v1365 = vsel %vm50, %v1359, %v1363
    %v1367 = vsel %vm228, %v1365, 0
    %1369 = vmatprep.subr.mxu0 0.0
    %1370 = vmatpush1.msra.mxu0 0.0
    %1371 = vmatprep.subr.mxu0 0.0
    %1372 = vmatpush1.msra.mxu0 0.0
    %1373 = vmatprep.subr.mxu0 0.0
    %1374 = vmatpush1.msra.mxu0 0.0
    %1375 = vmatprep.subr.mxu0 0.0
    %1376 = vmatpush1.msra.mxu0 0.0
    %1377 = vmatprep.subr.mxu0 0.0
    %1378 = vmatpush1.msra.mxu0 0.0
    %1379 = vmatprep.subr.mxu0 0.0
    %1380 = vmatpush1.msra.mxu0 0.0
    %1381 = vmatprep.subr.mxu0 0.0
    %1382 = vmatpush1.msra.mxu0 0.0
    %1383 = vmatprep.subr.mxu0 0.0
    %1384 = vmatpush1.msra.mxu0 0.0
    %1385 = vmatprep.subr.mxu0 0.0
    %1386 = vmatpush1.msra.mxu0 %v220
    %1387 = vmatprep.subr.mxu0 0.0
    %1388 = vmatpush1.msra.mxu0 %v219
    %1389 = vmatprep.subr.mxu0 0.0
    %1390 = vmatpush1.msra.mxu0 %v218
    %1391 = vmatprep.subr.mxu0 0.0
    %1392 = vmatpush1.msra.mxu0 %v217
    %1393 = vmatprep.subr.mxu0 0.0
    %1394 = vmatpush1.msra.mxu0 %v216
    %1395 = vmatprep.subr.mxu0 0.0
    %1396 = vmatpush1.msra.mxu0 %v215
    %1397 = vmatprep.subr.mxu0 0.0
    %1398 = vmatpush1.msra.mxu0 %v214
    %1399 = vmatprep.subr.mxu0 0.0
    %1400 = vmatpush1.msra.mxu0 %v213
    %1401 = vmatprep.subr.mxu0 0.0
    %1402 = vmatpush2.msra.mxu0 0.0
    %1403 = vmatprep.subr.mxu0 0.0
    %1404 = vmatpush2.msra.mxu0 0.0
    %1405 = vmatprep.subr.mxu0 0.0
    %1406 = vmatpush2.msra.mxu0 0.0
    %1407 = vmatprep.subr.mxu0 0.0
    %1408 = vmatpush2.msra.mxu0 0.0
    %1409 = vmatprep.subr.mxu0 0.0
    %1410 = vmatpush2.msra.mxu0 0.0
    %1411 = vmatprep.subr.mxu0 0.0
    %1412 = vmatpush2.msra.mxu0 0.0
    %1413 = vmatprep.subr.mxu0 0.0
    %1414 = vmatpush2.msra.mxu0 0.0
    %1415 = vmatprep.subr.mxu0 0.0
    %1416 = vmatpush2.msra.mxu0 0.0
    %1417 = vmatprep.subr.mxu0 0.0
    %1418 = vmatpush2.msra.mxu0 0.0
    %1419 = vmatprep.subr.mxu0 0.0
    %1420 = vmatpush2.msra.mxu0 0.0
    %1421 = vmatprep.subr.mxu0 0.0
    %1422 = vmatpush2.msra.mxu0 0.0
    %1423 = vmatprep.subr.mxu0 0.0
    %1424 = vmatpush2.msra.mxu0 0.0
    %1425 = vmatprep.subr.mxu0 0.0
    %1426 = vmatpush2.msra.mxu0 0.0
    %1427 = vmatprep.subr.mxu0 0.0
    %1428 = vmatpush2.msra.mxu0 0.0
    %1429 = vmatprep.subr.mxu0 0.0
    %1430 = vmatpush2.msra.mxu0 0.0
    %1431 = vmatprep.subr.mxu0 0.0
    %1432 = vmatpush2.msra.mxu0 0.0
    %1433 = vmatprep.mubr.f32.mxu0 0.0
    %1434 = vmatmul.mubr.f32.gmra.mxu0 %v1367
    %v1435 = vpop.f32.mrf.mxu0
    %v1436 = vadd.f32 %v226, %v1435
    %v1437 = vpop.f32.mrf.mxu0
    %1438 = vdwg.mxu0
    %v1439 = vtanh.pop %v1436
    %v1440 = vld [vmem:[%s6] sm:$0xff]
    %v1441 = vld [vmem:[%s6 + $0x8] sm:$0xff]
    %v1442 = vld [vmem:[%s6 + $0x10] sm:$0xff]
    %v1443 = vld [vmem:[%s6 + $0x18] sm:$0xff]
    %v1444 = vld [vmem:[%s7] sm:$0x1]
    %v1446 = vlaneseq
    %v1447 = vshrl.u32 %v1446, 7
    %v1448 = vsub.s32 0, %v1447
    %v1449 = vrot.slane %v1444, %v1448
    %v1452 = vsel %vm50, %v1439, 0
    %1454 = vmatprep.subr.mxu0 0.0
    %1455 = vmatpush1.msra.mxu0 0.0
    %1456 = vmatprep.subr.mxu0 0.0
    %1457 = vmatpush1.msra.mxu0 0.0
    %1458 = vmatprep.subr.mxu0 0.0
    %1459 = vmatpush1.msra.mxu0 0.0
    %1460 = vmatprep.subr.mxu0 0.0
    %1461 = vmatpush1.msra.mxu0 0.0
    %1462 = vmatprep.subr.mxu0 0.0
    %1463 = vmatpush1.msra.mxu0 0.0
    %1464 = vmatprep.subr.mxu0 0.0
    %1465 = vmatpush1.msra.mxu0 0.0
    %1466 = vmatprep.subr.mxu0 0.0
    %1467 = vmatpush1.msra.mxu0 0.0
    %1468 = vmatprep.subr.mxu0 0.0
    %1469 = vmatpush1.msra.mxu0 0.0
    %1470 = vmatprep.subr.mxu0 0.0
    %1471 = vmatpush1.msra.mxu0 0.0
    %1472 = vmatprep.subr.mxu0 0.0
    %1473 = vmatpush1.msra.mxu0 0.0
    %1474 = vmatprep.subr.mxu0 0.0
    %1475 = vmatpush1.msra.mxu0 0.0
    %1476 = vmatprep.subr.mxu0 0.0
    %1477 = vmatpush1.msra.mxu0 0.0
    %1478 = vmatprep.subr.mxu0 0.0
    %1479 = vmatpush1.msra.mxu0 %v1443
    %1480 = vmatprep.subr.mxu0 0.0
    %1481 = vmatpush1.msra.mxu0 %v1442
    %1482 = vmatprep.subr.mxu0 0.0
    %1483 = vmatpush1.msra.mxu0 %v1441
    %1484 = vmatprep.subr.mxu0 0.0
    %1485 = vmatpush1.msra.mxu0 %v1440
    %1486 = vmatprep.subr.mxu0 0.0
    %1487 = vmatpush2.msra.mxu0 0.0
    %1488 = vmatprep.subr.mxu0 0.0
    %1489 = vmatpush2.msra.mxu0 0.0
    %1490 = vmatprep.subr.mxu0 0.0
    %1491 = vmatpush2.msra.mxu0 0.0
    %1492 = vmatprep.subr.mxu0 0.0
    %1493 = vmatpush2.msra.mxu0 0.0
    %1494 = vmatprep.subr.mxu0 0.0
    %1495 = vmatpush2.msra.mxu0 0.0
    %1496 = vmatprep.subr.mxu0 0.0
    %1497 = vmatpush2.msra.mxu0 0.0
    %1498 = vmatprep.subr.mxu0 0.0
    %1499 = vmatpush2.msra.mxu0 0.0
    %1500 = vmatprep.subr.mxu0 0.0
    %1501 = vmatpush2.msra.mxu0 0.0
    %1502 = vmatprep.subr.mxu0 0.0
    %1503 = vmatpush2.msra.mxu0 0.0
    %1504 = vmatprep.subr.mxu0 0.0
    %1505 = vmatpush2.msra.mxu0 0.0
    %1506 = vmatprep.subr.mxu0 0.0
    %1507 = vmatpush2.msra.mxu0 0.0
    %1508 = vmatprep.subr.mxu0 0.0
    %1509 = vmatpush2.msra.mxu0 0.0
    %1510 = vmatprep.subr.mxu0 0.0
    %1511 = vmatpush2.msra.mxu0 0.0
    %1512 = vmatprep.subr.mxu0 0.0
    %1513 = vmatpush2.msra.mxu0 0.0
    %1514 = vmatprep.subr.mxu0 0.0
    %1515 = vmatpush2.msra.mxu0 0.0
    %1516 = vmatprep.subr.mxu0 0.0
    %1517 = vmatpush2.msra.mxu0 0.0
    %1518 = vmatprep.mubr.f32.mxu0 0.0
    %1519 = vmatmul.mubr.f32.gmra.mxu0 %v1452
    %v1520 = vpop.f32.mrf.mxu0
    %v1521 = vadd.f32 %v1449, %v1520
    %v1522 = vpop.f32.mrf.mxu0
    %1523 = vdwg.mxu0
    %vm1524 = vcmask 15360
    %1525 = vst.msk [vmem:[%s8] sm:$0xff] %vm1524, %v1521
    // Predicated region
    $region38: #{tpu_custom_call.1} parent=1 // pred_check
      _
    $region39: #{tpu_custom_call.1} parent=1 // pred_check_branch
      %1527 = sbr.rel (0) target = $region41
    $region40: #{tpu_custom_call.1} parent=1 // pred_region
      _
    $region41: #{tpu_custom_call.1} parent=1 // pred_fallthru
      _
    // Predicated region
    $region42: #{tpu_custom_call.1} parent=1 // pred_check
      _
    $region43: #{tpu_custom_call.1} parent=1 // pred_check_branch
      %1529 = sbr.rel (0) target = $region45
    $region44: #{tpu_custom_call.1} parent=1 // pred_region
      _
    $region45: #{tpu_custom_call.1} parent=1 // pred_fallthru
      _
    %1530 = vsyncpa [#allocation3], 1

</llo_original>
